<compile_context>
chip_gen: v6e
topology: v6e:2x2x1
jax: 0.10.0
libtpu: 0.0.40
codegen_flags: <defaults>
</compile_context>

<pallas_src>
import jax
import jax.numpy as jnp
from jax.experimental import pallas as pl
from jax.experimental.pallas import tpu as pltpu


# ---------------------------------------------------------------------------
# Vocabulary (same construction as the PyTorch source)
# ---------------------------------------------------------------------------
_TOKEN_EXPAND = 10

MODULES_CONFIG = {
    "dense": {"out_range": [4]},
    "conv":  {"out_range": [3]},
    "rnn":   {"out_range": [2]},
}


class Vocabulary:
    def __init__(self, token_list):
        self.vocab = {}
        for idx, token in enumerate(token_list):
            self.vocab[token] = idx
            self.vocab[idx] = token

    @property
    def size(self):
        return len(self.vocab) // 2

    def get_code(self, token_list):
        return [self.vocab[token] for token in token_list]


def get_vocabulary(modules_config):
    token_list = []
    for k in modules_config.keys():
        token_list += [f"{k}-%d" % i
                       for i in range(1, _TOKEN_EXPAND * max(modules_config[k]["out_range"]) + 1)]
    return Vocabulary(token_list)


# ---------------------------------------------------------------------------
# Weight-layout helper: per-gate interleave of fwd/bwd columns
#   [..., 4H] x 2  ->  [..., 8H]  laid out [i_f, i_b, f_f, f_b, g_f, g_b, o_f, o_b]
# so that slicing the 8H gate vector in 2H chunks yields [gate_f | gate_b]
# blocks that line up with the stacked [h_f | h_b] / [c_f | c_b] state.
# ---------------------------------------------------------------------------
def _interleave_gates(a_fwd, a_bwd, H):
    parts = []
    for k in range(4):
        parts.append(a_fwd[..., k * H:(k + 1) * H])
        parts.append(a_bwd[..., k * H:(k + 1) * H])
    return jnp.concatenate(parts, axis=-1)


# ---------------------------------------------------------------------------
# Fused bidirectional LSTM kernel (single grid step, both directions stacked)
# ---------------------------------------------------------------------------
def _bilstm_fused_kernel(codes_ref, emb_ref, wihf_ref, wihb_ref, whh_ref, b_ref,
                         out_ref, hn_ref, cn_ref, x_sc):
    """codes:(T,) SMEM   emb:(V,E)   wihf/wihb:(E,8H)   whh:(2H,8H)   b:(1,8H)
       out:(T,2H)   hn,cn:(2,H)      scratch x:(T,E)"""
    T, H2 = out_ref.shape
    H = H2 // 2

    # ---- prologue (all off the serial recurrence chain) --------------------
    # Fused embedding gather: codes live in SMEM (scalar prefetch), table in VMEM.
    for t in range(T):
        x_sc[t:t + 1, :] = emb_ref[pl.ds(codes_ref[t], 1), :]
    x = x_sc[...]                                                       # (T, E)

    # Hoisted input projections for both directions (interleaved gate layout:
    # wihf hits the fwd gate columns, wihb the bwd gate columns).
    pf = jnp.dot(x, wihf_ref[...], preferred_element_type=jnp.float32)  # (T, 8H)
    pb = jnp.dot(x, wihb_ref[...], preferred_element_type=jnp.float32)  # (T, 8H)
    bias = b_ref[...]                                                   # (1, 8H)
    # Per-step precomputed gate inputs; the backward direction reads the
    # time-reversed row.  All indices are STATIC python ints.
    pre = [pf[t:t + 1, :] + pb[T - 1 - t:T - t, :] + bias for t in range(T)]

    whh = whh_ref[...]        # (2H, 8H) block-diagonal, hoisted out of the loop
    # TODO(synk): could keep whh staged in the MXU across the unrolled steps via
    # pltpu.matmul_push_rhs / matmul_acc_lhs / matmul_pop if the bundle dump
    # shows Mosaic re-pushing the RHS every iteration.

    # ---- fused bidirectional recurrence: state carried in vregs ------------
    h = jnp.zeros((1, 2 * H), jnp.float32)       # [h_fwd | h_bwd]
    c = jnp.zeros((1, 2 * H), jnp.float32)       # [c_fwd | c_bwd]
    for t in range(T):                           # T is a small static int -> unrolled
        g = pre[t] + jnp.dot(h, whh, preferred_element_type=jnp.float32)   # (1, 8H)
        # Two full-width EUP passes; gate layout [i_f,i_b,f_f,f_b,g_f,g_b,o_f,o_b]
        sig = jax.nn.sigmoid(g)
        tnh = jnp.tanh(g)
        i_g = sig[:, 0:2 * H]          # [i_f | i_b]
        f_g = sig[:, 2 * H:4 * H]      # [f_f | f_b]
        g_g = tnh[:, 4 * H:6 * H]      # [g_f | g_b]
        o_g = sig[:, 6 * H:8 * H]      # [o_f | o_b]
        c = f_g * c + i_g * g_g
        h = o_g * jnp.tanh(c)
        # Static-index stores, off the recurrence dependence chain.
        out_ref[t:t + 1, 0:H] = h[:, 0:H]                   # fwd output, time t
        out_ref[T - 1 - t:T - t, H:2 * H] = h[:, H:2 * H]   # bwd output, time T-1-t

    # Final states written exactly once.
    hn_ref[0:1, :] = h[:, 0:H]
    hn_ref[1:2, :] = h[:, H:2 * H]
    cn_ref[0:1, :] = c[:, 0:H]
    cn_ref[1:2, :] = c[:, H:2 * H]


@jax.jit
def _encoder_forward(codes, emb_w, wih_f_pad, wih_b_pad, whh_bd, bias_cat):
    """codes:(T,) i32, emb_w:(V,E), wih_*_pad:(E,8H), whh_bd:(2H,8H), bias:(1,8H)
       -> (output:(1,T,2H), h_n:(2,1,H), c_n:(2,1,H))"""
    T = codes.shape[0]
    V, E = emb_w.shape
    H = whh_bd.shape[0] // 2

    out, hn, cn = pl.pallas_call(
        _bilstm_fused_kernel,
        out_shape=(
            jax.ShapeDtypeStruct((T, 2 * H), jnp.float32),   # bidir output
            jax.ShapeDtypeStruct((2, H), jnp.float32),       # h_n
            jax.ShapeDtypeStruct((2, H), jnp.float32),       # c_n
        ),
        grid_spec=pltpu.PrefetchScalarGridSpec(
            num_scalar_prefetch=1,                           # codes -> SMEM
            grid=(1,),
            in_specs=[
                pl.BlockSpec((V, E), lambda i, _c: (0, 0)),          # embedding table
                pl.BlockSpec((E, 8 * H), lambda i, _c: (0, 0)),      # W_ih fwd (padded)
                pl.BlockSpec((E, 8 * H), lambda i, _c: (0, 0)),      # W_ih bwd (padded)
                pl.BlockSpec((2 * H, 8 * H), lambda i, _c: (0, 0)),  # W_hh block-diag
                pl.BlockSpec((1, 8 * H), lambda i, _c: (0, 0)),      # combined bias
            ],
            out_specs=[
                pl.BlockSpec((T, 2 * H), lambda i, _c: (0, 0)),
                pl.BlockSpec((2, H), lambda i, _c: (0, 0)),
                pl.BlockSpec((2, H), lambda i, _c: (0, 0)),
            ],
            scratch_shapes=[pltpu.VMEM((T, E), jnp.float32)],        # gathered x
        ),
        compiler_params=pltpu.CompilerParams(
            dimension_semantics=("arbitrary",)),
    )(codes, emb_w, wih_f_pad, wih_b_pad, whh_bd, bias_cat)

    # Trivial metadata reshapes only (no gather / concat left in the wrapper).
    output = out[None]            # (1, T, 2H)
    h_n = hn[:, None, :]          # (2, 1, H)
    c_n = cn[:, None, :]          # (2, 1, H)
    return output, h_n, c_n


# ---------------------------------------------------------------------------
# EncoderNet in JAX
# ---------------------------------------------------------------------------
class EncoderNetPallas:
    def __init__(self, input_size, hidden_size, modules_config, key):
        self.input_size = input_size
        self.hidden_size = hidden_size
        self.vocab = get_vocabulary(modules_config)

        ks = jax.random.split(key, 9)
        H, E, V = hidden_size, input_size, self.vocab.size
        s = 1.0 / jnp.sqrt(H)

        # Embedding(vocab_size, input_size)
        self.emb_w = jax.random.normal(ks[0], (V, E), jnp.float32)

        def u(k, shape):
            return jax.random.uniform(k, shape, jnp.float32, -s, s)

        # forward direction (PyTorch l0); gate order i, f, g, o
        self.w_ih_f = u(ks[1], (4 * H, E))
        self.w_hh_f = u(ks[2], (4 * H, H))
        self.b_ih_f = u(ks[3], (4 * H,))
        self.b_hh_f = u(ks[4], (4 * H,))
        # reverse direction (PyTorch l0_reverse)
        self.w_ih_b = u(ks[5], (4 * H, E))
        self.w_hh_b = u(ks[6], (4 * H, H))
        self.b_ih_b = u(ks[7], (4 * H,))
        self.b_hh_b = u(ks[8], (4 * H,))

        # One-time weight prep: transpose, combine biases, and interleave the
        # fwd/bwd gate columns so the kernel's stacked [fwd|bwd] state works
        # directly.  W_hh becomes block-diagonal over the stacked hidden state.
        zE = jnp.zeros((E, 4 * H), jnp.float32)
        zH = jnp.zeros((H, 4 * H), jnp.float32)
        self.wih_f_pad = _interleave_gates(self.w_ih_f.T, zE, H)          # (E, 8H)
        self.wih_b_pad = _interleave_gates(zE, self.w_ih_b.T, H)          # (E, 8H)
        self.whh_bd = jnp.concatenate(
            [_interleave_gates(self.w_hh_f.T, zH, H),                     # rows <- h_f
             _interleave_gates(zH, self.w_hh_b.T, H)], axis=0)            # rows <- h_b
        self.bias_cat = _interleave_gates(self.b_ih_f + self.b_hh_f,
                                          self.b_ih_b + self.b_hh_b, H)[None, :]  # (1, 8H)

    def embedding(self, token_list):
        # TODO(synk): token -> code lookup is host-side Python (data-dependent
        # dict lookup); the int gather into the embedding table stays in JAX.
        codes = jnp.asarray(self.vocab.get_code(token_list), dtype=jnp.int32)
        return self.emb_w[codes]                      # (T, E)

    def forward(self, token_list):
        codes = jnp.asarray(self.vocab.get_code(token_list), dtype=jnp.int32)
        output, h_n, c_n = _encoder_forward(codes, self.emb_w, self.wih_f_pad,
                                            self.wih_b_pad, self.whh_bd,
                                            self.bias_cat)
        return output, (h_n, c_n)


# ---------------------------------------------------------------------------
# Pure-JAX reference (same math) for a correctness check
# ---------------------------------------------------------------------------
def _ref_lstm_dir(x, w_ih, w_hh, b_ih, b_hh):
    H = w_hh.shape[1]
    h = jnp.zeros((1, H), jnp.float32)
    c = jnp.zeros((1, H), jnp.float32)
    outs = []
    for t in range(x.shape[0]):
        g = x[t:t + 1] @ w_ih.T + h @ w_hh.T + b_ih + b_hh
        i = jax.nn.sigmoid(g[:, 0 * H:1 * H])
        f = jax.nn.sigmoid(g[:, 1 * H:2 * H])
        gg = jnp.tanh(g[:, 2 * H:3 * H])
        o = jax.nn.sigmoid(g[:, 3 * H:4 * H])
        c = f * c + i * gg
        h = o * jnp.tanh(c)
        outs.append(h)
    return jnp.concatenate(outs, axis=0), h, c


if __name__ == "__main__":
    INPUT_SIZE = 32
    HIDDEN_SIZE = 32
    SEQ = 8

    key = jax.random.PRNGKey(0)
    net = EncoderNetPallas(INPUT_SIZE, HIDDEN_SIZE, MODULES_CONFIG, key)

    token_list = ["dense-1", "conv-2", "rnn-3", "dense-5",
                  "conv-7", "rnn-11", "dense-13", "conv-17"][:SEQ]

    output, (h_n, c_n) = net.forward(token_list)
    jax.block_until_ready((output, h_n, c_n))

    # shape checks
    assert output.shape == (1, SEQ, 2 * HIDDEN_SIZE)
    assert h_n.shape == (2, 1, HIDDEN_SIZE)
    assert c_n.shape == (2, 1, HIDDEN_SIZE)

    # numerical check against a pure-JAX reference bidirectional LSTM
    x = net.embedding(token_list)
    ref_f, ref_hf, ref_cf = _ref_lstm_dir(x, net.w_ih_f, net.w_hh_f, net.b_ih_f, net.b_hh_f)
    ref_b_rev, ref_hb, ref_cb = _ref_lstm_dir(x[::-1], net.w_ih_b, net.w_hh_b, net.b_ih_b, net.b_hh_b)
    ref_out = jnp.concatenate([ref_f, ref_b_rev[::-1]], axis=-1)[None]
    ref_hn = jnp.stack([ref_hf, ref_hb], axis=0)
    ref_cn = jnp.stack([ref_cf, ref_cb], axis=0)

    assert jnp.allclose(output, ref_out, rtol=1e-5, atol=1e-5)
    assert jnp.allclose(h_n, ref_hn, rtol=1e-5, atol=1e-5)
    assert jnp.allclose(c_n, ref_cn, rtol=1e-5, atol=1e-5)

    print("KERNEL_OK")
</pallas_src>

<mosaic_0001>
module attributes {stable_mosaic.version = 11 : i64} {
  func.func @_bilstm_fused_kernel(%arg0: i32, %arg1: memref<8xi32, #tpu.memory_space<smem>>, %arg2: memref<90x32xf32, #tpu.memory_space<vmem>>, %arg3: memref<32x256xf32, #tpu.memory_space<vmem>>, %arg4: memref<32x256xf32, #tpu.memory_space<vmem>>, %arg5: memref<64x256xf32, #tpu.memory_space<vmem>>, %arg6: memref<1x256xf32, #tpu.memory_space<vmem>>, %arg7: memref<8x64xf32, #tpu.memory_space<vmem>>, %arg8: memref<2x32xf32, #tpu.memory_space<vmem>>, %arg9: memref<2x32xf32, #tpu.memory_space<vmem>>, %arg10: memref<8x32xf32, #tpu.memory_space<vmem>>) attributes {dimension_semantics = [#tpu.dimension_semantics<arbitrary>], iteration_bounds = array<i64: 1>, scalar_prefetch = 1 : i64, scratch_operands = 1 : i64, tpu.core_type = #tpu.core_type<tc>, window_params = [{pipeline_mode = #tpu.pipeline_mode<synchronous>, transform_indices = @transform_0, window_bounds = array<i64: 90, 32>}, {pipeline_mode = #tpu.pipeline_mode<synchronous>, transform_indices = @transform_1, window_bounds = array<i64: 32, 256>}, {pipeline_mode = #tpu.pipeline_mode<synchronous>, transform_indices = @transform_2, window_bounds = array<i64: 32, 256>}, {pipeline_mode = #tpu.pipeline_mode<synchronous>, transform_indices = @transform_3, window_bounds = array<i64: 64, 256>}, {pipeline_mode = #tpu.pipeline_mode<synchronous>, transform_indices = @transform_4, window_bounds = array<i64: 1, 256>}, {pipeline_mode = #tpu.pipeline_mode<synchronous>, transform_indices = @transform_5, window_bounds = array<i64: 8, 64>}, {pipeline_mode = #tpu.pipeline_mode<synchronous>, transform_indices = @transform_6, window_bounds = array<i64: 2, 32>}, {pipeline_mode = #tpu.pipeline_mode<synchronous>, transform_indices = @transform_7, window_bounds = array<i64: 2, 32>}]} {
    %c0 = arith.constant 0 : index
    %0 = memref.load %arg1[%c0] : memref<8xi32, #tpu.memory_space<smem>>
    %1 = arith.index_cast %0 : i32 to index
    %c0_0 = arith.constant 0 : index
    %2 = vector.load %arg2[%1, %c0_0] : memref<90x32xf32, #tpu.memory_space<vmem>>, vector<1x32xf32>
    %c0_1 = arith.constant 0 : index
    %c0_2 = arith.constant 0 : index
    %3 = vector.load %arg10[%c0_1, %c0_2] : memref<8x32xf32, #tpu.memory_space<vmem>>, vector<1x32xf32>
    tpu.vector_store %arg10[%c0_1, %c0_2], %2 {strides = array<i32>} : memref<8x32xf32, #tpu.memory_space<vmem>>, vector<1x32xf32>,
    %c1 = arith.constant 1 : index
    %4 = memref.load %arg1[%c1] : memref<8xi32, #tpu.memory_space<smem>>
    %5 = arith.index_cast %4 : i32 to index
    %c0_3 = arith.constant 0 : index
    %6 = vector.load %arg2[%5, %c0_3] : memref<90x32xf32, #tpu.memory_space<vmem>>, vector<1x32xf32>
    %c1_4 = arith.constant 1 : index
    %c0_5 = arith.constant 0 : index
    %7 = vector.load %arg10[%c1_4, %c0_5] : memref<8x32xf32, #tpu.memory_space<vmem>>, vector<1x32xf32>
    tpu.vector_store %arg10[%c1_4, %c0_5], %6 {strides = array<i32>} : memref<8x32xf32, #tpu.memory_space<vmem>>, vector<1x32xf32>,
    %c2 = arith.constant 2 : index
    %8 = memref.load %arg1[%c2] : memref<8xi32, #tpu.memory_space<smem>>
    %9 = arith.index_cast %8 : i32 to index
    %c0_6 = arith.constant 0 : index
    %10 = vector.load %arg2[%9, %c0_6] : memref<90x32xf32, #tpu.memory_space<vmem>>, vector<1x32xf32>
    %c2_7 = arith.constant 2 : index
    %c0_8 = arith.constant 0 : index
    %11 = vector.load %arg10[%c2_7, %c0_8] : memref<8x32xf32, #tpu.memory_space<vmem>>, vector<1x32xf32>
    tpu.vector_store %arg10[%c2_7, %c0_8], %10 {strides = array<i32>} : memref<8x32xf32, #tpu.memory_space<vmem>>, vector<1x32xf32>,
    %c3 = arith.constant 3 : index
    %12 = memref.load %arg1[%c3] : memref<8xi32, #tpu.memory_space<smem>>
    %13 = arith.index_cast %12 : i32 to index
    %c0_9 = arith.constant 0 : index
    %14 = vector.load %arg2[%13, %c0_9] : memref<90x32xf32, #tpu.memory_space<vmem>>, vector<1x32xf32>
    %c3_10 = arith.constant 3 : index
    %c0_11 = arith.constant 0 : index
    %15 = vector.load %arg10[%c3_10, %c0_11] : memref<8x32xf32, #tpu.memory_space<vmem>>, vector<1x32xf32>
    tpu.vector_store %arg10[%c3_10, %c0_11], %14 {strides = array<i32>} : memref<8x32xf32, #tpu.memory_space<vmem>>, vector<1x32xf32>,
    %c4 = arith.constant 4 : index
    %16 = memref.load %arg1[%c4] : memref<8xi32, #tpu.memory_space<smem>>
    %17 = arith.index_cast %16 : i32 to index
    %c0_12 = arith.constant 0 : index
    %18 = vector.load %arg2[%17, %c0_12] : memref<90x32xf32, #tpu.memory_space<vmem>>, vector<1x32xf32>
    %c4_13 = arith.constant 4 : index
    %c0_14 = arith.constant 0 : index
    %19 = vector.load %arg10[%c4_13, %c0_14] : memref<8x32xf32, #tpu.memory_space<vmem>>, vector<1x32xf32>
    tpu.vector_store %arg10[%c4_13, %c0_14], %18 {strides = array<i32>} : memref<8x32xf32, #tpu.memory_space<vmem>>, vector<1x32xf32>,
    %c5 = arith.constant 5 : index
    %20 = memref.load %arg1[%c5] : memref<8xi32, #tpu.memory_space<smem>>
    %21 = arith.index_cast %20 : i32 to index
    %c0_15 = arith.constant 0 : index
    %22 = vector.load %arg2[%21, %c0_15] : memref<90x32xf32, #tpu.memory_space<vmem>>, vector<1x32xf32>
    %c5_16 = arith.constant 5 : index
    %c0_17 = arith.constant 0 : index
    %23 = vector.load %arg10[%c5_16, %c0_17] : memref<8x32xf32, #tpu.memory_space<vmem>>, vector<1x32xf32>
    tpu.vector_store %arg10[%c5_16, %c0_17], %22 {strides = array<i32>} : memref<8x32xf32, #tpu.memory_space<vmem>>, vector<1x32xf32>,
    %c6 = arith.constant 6 : index
    %24 = memref.load %arg1[%c6] : memref<8xi32, #tpu.memory_space<smem>>
    %25 = arith.index_cast %24 : i32 to index
    %c0_18 = arith.constant 0 : index
    %26 = vector.load %arg2[%25, %c0_18] : memref<90x32xf32, #tpu.memory_space<vmem>>, vector<1x32xf32>
    %c6_19 = arith.constant 6 : index
    %c0_20 = arith.constant 0 : index
    %27 = vector.load %arg10[%c6_19, %c0_20] : memref<8x32xf32, #tpu.memory_space<vmem>>, vector<1x32xf32>
    tpu.vector_store %arg10[%c6_19, %c0_20], %26 {strides = array<i32>} : memref<8x32xf32, #tpu.memory_space<vmem>>, vector<1x32xf32>,
    %c7 = arith.constant 7 : index
    %28 = memref.load %arg1[%c7] : memref<8xi32, #tpu.memory_space<smem>>
    %29 = arith.index_cast %28 : i32 to index
    %c0_21 = arith.constant 0 : index
    %30 = vector.load %arg2[%29, %c0_21] : memref<90x32xf32, #tpu.memory_space<vmem>>, vector<1x32xf32>
    %c7_22 = arith.constant 7 : index
    %c0_23 = arith.constant 0 : index
    %31 = vector.load %arg10[%c7_22, %c0_23] : memref<8x32xf32, #tpu.memory_space<vmem>>, vector<1x32xf32>
    tpu.vector_store %arg10[%c7_22, %c0_23], %30 {strides = array<i32>} : memref<8x32xf32, #tpu.memory_space<vmem>>, vector<1x32xf32>,
    %c0_24 = arith.constant 0 : index
    %c0_25 = arith.constant 0 : index
    %32 = vector.load %arg10[%c0_24, %c0_25] : memref<8x32xf32, #tpu.memory_space<vmem>>, vector<8x32xf32>
    %c0_26 = arith.constant 0 : index
    %c0_27 = arith.constant 0 : index
    %33 = vector.load %arg3[%c0_26, %c0_27] : memref<32x256xf32, #tpu.memory_space<vmem>>, vector<32x256xf32>
    %cst = arith.constant dense<0.000000e+00> : vector<8x256xf32>
    %34 = tpu.matmul %32, %33, %cst {dimension_numbers = #tpu.dot_dimension_numbers<[1], [0], [0], [1], [0, 0, 1, 1], [], []>} : vector<8x32xf32>, vector<32x256xf32>, vector<8x256xf32> -> vector<8x256xf32>
    %c0_28 = arith.constant 0 : index
    %c0_29 = arith.constant 0 : index
    %35 = vector.load %arg4[%c0_28, %c0_29] : memref<32x256xf32, #tpu.memory_space<vmem>>, vector<32x256xf32>
    %cst_30 = arith.constant dense<0.000000e+00> : vector<8x256xf32>
    %36 = tpu.matmul %32, %35, %cst_30 {dimension_numbers = #tpu.dot_dimension_numbers<[1], [0], [0], [1], [0, 0, 1, 1], [], []>} : vector<8x32xf32>, vector<32x256xf32>, vector<8x256xf32> -> vector<8x256xf32>
    %c0_31 = arith.constant 0 : index
    %c0_32 = arith.constant 0 : index
    %37 = vector.load %arg6[%c0_31, %c0_32] : memref<1x256xf32, #tpu.memory_space<vmem>>, vector<1x256xf32>
    %38 = vector.extract_strided_slice %34 {offsets = [0, 0], sizes = [1, 256], strides = [1, 1]} : vector<8x256xf32> to vector<1x256xf32>
    %39 = vector.extract_strided_slice %36 {offsets = [7, 0], sizes = [1, 256], strides = [1, 1]} : vector<8x256xf32> to vector<1x256xf32>
    %40 = arith.addf %38, %39 : vector<1x256xf32>
    %41 = arith.addf %40, %37 : vector<1x256xf32>
    %42 = vector.extract_strided_slice %34 {offsets = [1, 0], sizes = [1, 256], strides = [1, 1]} : vector<8x256xf32> to vector<1x256xf32>
    %43 = vector.extract_strided_slice %36 {offsets = [6, 0], sizes = [1, 256], strides = [1, 1]} : vector<8x256xf32> to vector<1x256xf32>
    %44 = arith.addf %42, %43 : vector<1x256xf32>
    %45 = arith.addf %44, %37 : vector<1x256xf32>
    %46 = vector.extract_strided_slice %34 {offsets = [2, 0], sizes = [1, 256], strides = [1, 1]} : vector<8x256xf32> to vector<1x256xf32>
    %47 = vector.extract_strided_slice %36 {offsets = [5, 0], sizes = [1, 256], strides = [1, 1]} : vector<8x256xf32> to vector<1x256xf32>
    %48 = arith.addf %46, %47 : vector<1x256xf32>
    %49 = arith.addf %48, %37 : vector<1x256xf32>
    %50 = vector.extract_strided_slice %34 {offsets = [3, 0], sizes = [1, 256], strides = [1, 1]} : vector<8x256xf32> to vector<1x256xf32>
    %51 = vector.extract_strided_slice %36 {offsets = [4, 0], sizes = [1, 256], strides = [1, 1]} : vector<8x256xf32> to vector<1x256xf32>
    %52 = arith.addf %50, %51 : vector<1x256xf32>
    %53 = arith.addf %52, %37 : vector<1x256xf32>
    %54 = vector.extract_strided_slice %34 {offsets = [4, 0], sizes = [1, 256], strides = [1, 1]} : vector<8x256xf32> to vector<1x256xf32>
    %55 = vector.extract_strided_slice %36 {offsets = [3, 0], sizes = [1, 256], strides = [1, 1]} : vector<8x256xf32> to vector<1x256xf32>
    %56 = arith.addf %54, %55 : vector<1x256xf32>
    %57 = arith.addf %56, %37 : vector<1x256xf32>
    %58 = vector.extract_strided_slice %34 {offsets = [5, 0], sizes = [1, 256], strides = [1, 1]} : vector<8x256xf32> to vector<1x256xf32>
    %59 = vector.extract_strided_slice %36 {offsets = [2, 0], sizes = [1, 256], strides = [1, 1]} : vector<8x256xf32> to vector<1x256xf32>
    %60 = arith.addf %58, %59 : vector<1x256xf32>
    %61 = arith.addf %60, %37 : vector<1x256xf32>
    %62 = vector.extract_strided_slice %34 {offsets = [6, 0], sizes = [1, 256], strides = [1, 1]} : vector<8x256xf32> to vector<1x256xf32>
    %63 = vector.extract_strided_slice %36 {offsets = [1, 0], sizes = [1, 256], strides = [1, 1]} : vector<8x256xf32> to vector<1x256xf32>
    %64 = arith.addf %62, %63 : vector<1x256xf32>
    %65 = arith.addf %64, %37 : vector<1x256xf32>
    %66 = vector.extract_strided_slice %34 {offsets = [7, 0], sizes = [1, 256], strides = [1, 1]} : vector<8x256xf32> to vector<1x256xf32>
    %67 = vector.extract_strided_slice %36 {offsets = [0, 0], sizes = [1, 256], strides = [1, 1]} : vector<8x256xf32> to vector<1x256xf32>
    %68 = arith.addf %66, %67 : vector<1x256xf32>
    %69 = arith.addf %68, %37 : vector<1x256xf32>
    %c0_33 = arith.constant 0 : index
    %c0_34 = arith.constant 0 : index
    %70 = vector.load %arg5[%c0_33, %c0_34] : memref<64x256xf32, #tpu.memory_space<vmem>>, vector<64x256xf32>
    %cst_35 = arith.constant 0.000000e+00 : f32
    %71 = vector.broadcast %cst_35 : f32 to vector<1x64xf32>
    %cst_36 = arith.constant 0.000000e+00 : f32
    %72 = vector.broadcast %cst_36 : f32 to vector<1x64xf32>
    %cst_37 = arith.constant dense<0.000000e+00> : vector<1x256xf32>
    %73 = tpu.matmul %71, %70, %cst_37 {dimension_numbers = #tpu.dot_dimension_numbers<[1], [0], [0], [1], [0, 0, 1, 1], [], []>} : vector<1x64xf32>, vector<64x256xf32>, vector<1x256xf32> -> vector<1x256xf32>
    %74 = arith.addf %41, %73 : vector<1x256xf32>
    %75 = arith.negf %74 : vector<1x256xf32>
    %76 = math.exp %75 : vector<1x256xf32>
    %cst_38 = arith.constant 1.000000e+00 : f32
    %77 = vector.broadcast %cst_38 : f32 to vector<1x256xf32>
    %78 = arith.addf %77, %76 : vector<1x256xf32>
    %79 = arith.divf %77, %78 : vector<1x256xf32>
    %80 = math.tanh %74 : vector<1x256xf32>
    %81 = vector.extract_strided_slice %79 {offsets = [0, 0], sizes = [1, 64], strides = [1, 1]} : vector<1x256xf32> to vector<1x64xf32>
    %82 = vector.extract_strided_slice %79 {offsets = [0, 64], sizes = [1, 64], strides = [1, 1]} : vector<1x256xf32> to vector<1x64xf32>
    %83 = vector.extract_strided_slice %80 {offsets = [0, 128], sizes = [1, 64], strides = [1, 1]} : vector<1x256xf32> to vector<1x64xf32>
    %84 = vector.extract_strided_slice %79 {offsets = [0, 192], sizes = [1, 64], strides = [1, 1]} : vector<1x256xf32> to vector<1x64xf32>
    %85 = arith.mulf %82, %72 : vector<1x64xf32>
    %86 = arith.mulf %81, %83 : vector<1x64xf32>
    %87 = arith.addf %85, %86 : vector<1x64xf32>
    %88 = math.tanh %87 : vector<1x64xf32>
    %89 = arith.mulf %84, %88 : vector<1x64xf32>
    %90 = vector.extract_strided_slice %89 {offsets = [0, 0], sizes = [1, 32], strides = [1, 1]} : vector<1x64xf32> to vector<1x32xf32>
    %c0_39 = arith.constant 0 : index
    %c0_40 = arith.constant 0 : index
    %91 = vector.load %arg7[%c0_39, %c0_40] : memref<8x64xf32, #tpu.memory_space<vmem>>, vector<1x32xf32>
    tpu.vector_store %arg7[%c0_39, %c0_40], %90 {strides = array<i32>} : memref<8x64xf32, #tpu.memory_space<vmem>>, vector<1x32xf32>,
    %92 = vector.extract_strided_slice %89 {offsets = [0, 32], sizes = [1, 32], strides = [1, 1]} : vector<1x64xf32> to vector<1x32xf32>
    %c7_41 = arith.constant 7 : index
    %c32 = arith.constant 32 : index
    %93 = vector.load %arg7[%c7_41, %c32] : memref<8x64xf32, #tpu.memory_space<vmem>>, vector<1x32xf32>
    tpu.vector_store %arg7[%c7_41, %c32], %92 {strides = array<i32>} : memref<8x64xf32, #tpu.memory_space<vmem>>, vector<1x32xf32>,
    %cst_42 = arith.constant dense<0.000000e+00> : vector<1x256xf32>
    %94 = tpu.matmul %89, %70, %cst_42 {dimension_numbers = #tpu.dot_dimension_numbers<[1], [0], [0], [1], [0, 0, 1, 1], [], []>} : vector<1x64xf32>, vector<64x256xf32>, vector<1x256xf32> -> vector<1x256xf32>
    %95 = arith.addf %45, %94 : vector<1x256xf32>
    %96 = arith.negf %95 : vector<1x256xf32>
    %97 = math.exp %96 : vector<1x256xf32>
    %cst_43 = arith.constant 1.000000e+00 : f32
    %98 = vector.broadcast %cst_43 : f32 to vector<1x256xf32>
    %99 = arith.addf %98, %97 : vector<1x256xf32>
    %100 = arith.divf %98, %99 : vector<1x256xf32>
    %101 = math.tanh %95 : vector<1x256xf32>
    %102 = vector.extract_strided_slice %100 {offsets = [0, 0], sizes = [1, 64], strides = [1, 1]} : vector<1x256xf32> to vector<1x64xf32>
    %103 = vector.extract_strided_slice %100 {offsets = [0, 64], sizes = [1, 64], strides = [1, 1]} : vector<1x256xf32> to vector<1x64xf32>
    %104 = vector.extract_strided_slice %101 {offsets = [0, 128], sizes = [1, 64], strides = [1, 1]} : vector<1x256xf32> to vector<1x64xf32>
    %105 = vector.extract_strided_slice %100 {offsets = [0, 192], sizes = [1, 64], strides = [1, 1]} : vector<1x256xf32> to vector<1x64xf32>
    %106 = arith.mulf %103, %87 : vector<1x64xf32>
    %107 = arith.mulf %102, %104 : vector<1x64xf32>
    %108 = arith.addf %106, %107 : vector<1x64xf32>
    %109 = math.tanh %108 : vector<1x64xf32>
    %110 = arith.mulf %105, %109 : vector<1x64xf32>
    %111 = vector.extract_strided_slice %110 {offsets = [0, 0], sizes = [1, 32], strides = [1, 1]} : vector<1x64xf32> to vector<1x32xf32>
    %c1_44 = arith.constant 1 : index
    %c0_45 = arith.constant 0 : index
    %112 = vector.load %arg7[%c1_44, %c0_45] : memref<8x64xf32, #tpu.memory_space<vmem>>, vector<1x32xf32>
    tpu.vector_store %arg7[%c1_44, %c0_45], %111 {strides = array<i32>} : memref<8x64xf32, #tpu.memory_space<vmem>>, vector<1x32xf32>,
    %113 = vector.extract_strided_slice %110 {offsets = [0, 32], sizes = [1, 32], strides = [1, 1]} : vector<1x64xf32> to vector<1x32xf32>
    %c6_46 = arith.constant 6 : index
    %c32_47 = arith.constant 32 : index
    %114 = vector.load %arg7[%c6_46, %c32_47] : memref<8x64xf32, #tpu.memory_space<vmem>>, vector<1x32xf32>
    tpu.vector_store %arg7[%c6_46, %c32_47], %113 {strides = array<i32>} : memref<8x64xf32, #tpu.memory_space<vmem>>, vector<1x32xf32>,
    %cst_48 = arith.constant dense<0.000000e+00> : vector<1x256xf32>
    %115 = tpu.matmul %110, %70, %cst_48 {dimension_numbers = #tpu.dot_dimension_numbers<[1], [0], [0], [1], [0, 0, 1, 1], [], []>} : vector<1x64xf32>, vector<64x256xf32>, vector<1x256xf32> -> vector<1x256xf32>
    %116 = arith.addf %49, %115 : vector<1x256xf32>
    %117 = arith.negf %116 : vector<1x256xf32>
    %118 = math.exp %117 : vector<1x256xf32>
    %cst_49 = arith.constant 1.000000e+00 : f32
    %119 = vector.broadcast %cst_49 : f32 to vector<1x256xf32>
    %120 = arith.addf %119, %118 : vector<1x256xf32>
    %121 = arith.divf %119, %120 : vector<1x256xf32>
    %122 = math.tanh %116 : vector<1x256xf32>
    %123 = vector.extract_strided_slice %121 {offsets = [0, 0], sizes = [1, 64], strides = [1, 1]} : vector<1x256xf32> to vector<1x64xf32>
    %124 = vector.extract_strided_slice %121 {offsets = [0, 64], sizes = [1, 64], strides = [1, 1]} : vector<1x256xf32> to vector<1x64xf32>
    %125 = vector.extract_strided_slice %122 {offsets = [0, 128], sizes = [1, 64], strides = [1, 1]} : vector<1x256xf32> to vector<1x64xf32>
    %126 = vector.extract_strided_slice %121 {offsets = [0, 192], sizes = [1, 64], strides = [1, 1]} : vector<1x256xf32> to vector<1x64xf32>
    %127 = arith.mulf %124, %108 : vector<1x64xf32>
    %128 = arith.mulf %123, %125 : vector<1x64xf32>
    %129 = arith.addf %127, %128 : vector<1x64xf32>
    %130 = math.tanh %129 : vector<1x64xf32>
    %131 = arith.mulf %126, %130 : vector<1x64xf32>
    %132 = vector.extract_strided_slice %131 {offsets = [0, 0], sizes = [1, 32], strides = [1, 1]} : vector<1x64xf32> to vector<1x32xf32>
    %c2_50 = arith.constant 2 : index
    %c0_51 = arith.constant 0 : index
    %133 = vector.load %arg7[%c2_50, %c0_51] : memref<8x64xf32, #tpu.memory_space<vmem>>, vector<1x32xf32>
    tpu.vector_store %arg7[%c2_50, %c0_51], %132 {strides = array<i32>} : memref<8x64xf32, #tpu.memory_space<vmem>>, vector<1x32xf32>,
    %134 = vector.extract_strided_slice %131 {offsets = [0, 32], sizes = [1, 32], strides = [1, 1]} : vector<1x64xf32> to vector<1x32xf32>
    %c5_52 = arith.constant 5 : index
    %c32_53 = arith.constant 32 : index
    %135 = vector.load %arg7[%c5_52, %c32_53] : memref<8x64xf32, #tpu.memory_space<vmem>>, vector<1x32xf32>
    tpu.vector_store %arg7[%c5_52, %c32_53], %134 {strides = array<i32>} : memref<8x64xf32, #tpu.memory_space<vmem>>, vector<1x32xf32>,
    %cst_54 = arith.constant dense<0.000000e+00> : vector<1x256xf32>
    %136 = tpu.matmul %131, %70, %cst_54 {dimension_numbers = #tpu.dot_dimension_numbers<[1], [0], [0], [1], [0, 0, 1, 1], [], []>} : vector<1x64xf32>, vector<64x256xf32>, vector<1x256xf32> -> vector<1x256xf32>
    %137 = arith.addf %53, %136 : vector<1x256xf32>
    %138 = arith.negf %137 : vector<1x256xf32>
    %139 = math.exp %138 : vector<1x256xf32>
    %cst_55 = arith.constant 1.000000e+00 : f32
    %140 = vector.broadcast %cst_55 : f32 to vector<1x256xf32>
    %141 = arith.addf %140, %139 : vector<1x256xf32>
    %142 = arith.divf %140, %141 : vector<1x256xf32>
    %143 = math.tanh %137 : vector<1x256xf32>
    %144 = vector.extract_strided_slice %142 {offsets = [0, 0], sizes = [1, 64], strides = [1, 1]} : vector<1x256xf32> to vector<1x64xf32>
    %145 = vector.extract_strided_slice %142 {offsets = [0, 64], sizes = [1, 64], strides = [1, 1]} : vector<1x256xf32> to vector<1x64xf32>
    %146 = vector.extract_strided_slice %143 {offsets = [0, 128], sizes = [1, 64], strides = [1, 1]} : vector<1x256xf32> to vector<1x64xf32>
    %147 = vector.extract_strided_slice %142 {offsets = [0, 192], sizes = [1, 64], strides = [1, 1]} : vector<1x256xf32> to vector<1x64xf32>
    %148 = arith.mulf %145, %129 : vector<1x64xf32>
    %149 = arith.mulf %144, %146 : vector<1x64xf32>
    %150 = arith.addf %148, %149 : vector<1x64xf32>
    %151 = math.tanh %150 : vector<1x64xf32>
    %152 = arith.mulf %147, %151 : vector<1x64xf32>
    %153 = vector.extract_strided_slice %152 {offsets = [0, 0], sizes = [1, 32], strides = [1, 1]} : vector<1x64xf32> to vector<1x32xf32>
    %c3_56 = arith.constant 3 : index
    %c0_57 = arith.constant 0 : index
    %154 = vector.load %arg7[%c3_56, %c0_57] : memref<8x64xf32, #tpu.memory_space<vmem>>, vector<1x32xf32>
    tpu.vector_store %arg7[%c3_56, %c0_57], %153 {strides = array<i32>} : memref<8x64xf32, #tpu.memory_space<vmem>>, vector<1x32xf32>,
    %155 = vector.extract_strided_slice %152 {offsets = [0, 32], sizes = [1, 32], strides = [1, 1]} : vector<1x64xf32> to vector<1x32xf32>
    %c4_58 = arith.constant 4 : index
    %c32_59 = arith.constant 32 : index
    %156 = vector.load %arg7[%c4_58, %c32_59] : memref<8x64xf32, #tpu.memory_space<vmem>>, vector<1x32xf32>
    tpu.vector_store %arg7[%c4_58, %c32_59], %155 {strides = array<i32>} : memref<8x64xf32, #tpu.memory_space<vmem>>, vector<1x32xf32>,
    %cst_60 = arith.constant dense<0.000000e+00> : vector<1x256xf32>
    %157 = tpu.matmul %152, %70, %cst_60 {dimension_numbers = #tpu.dot_dimension_numbers<[1], [0], [0], [1], [0, 0, 1, 1], [], []>} : vector<1x64xf32>, vector<64x256xf32>, vector<1x256xf32> -> vector<1x256xf32>
    %158 = arith.addf %57, %157 : vector<1x256xf32>
    %159 = arith.negf %158 : vector<1x256xf32>
    %160 = math.exp %159 : vector<1x256xf32>
    %cst_61 = arith.constant 1.000000e+00 : f32
    %161 = vector.broadcast %cst_61 : f32 to vector<1x256xf32>
    %162 = arith.addf %161, %160 : vector<1x256xf32>
    %163 = arith.divf %161, %162 : vector<1x256xf32>
    %164 = math.tanh %158 : vector<1x256xf32>
    %165 = vector.extract_strided_slice %163 {offsets = [0, 0], sizes = [1, 64], strides = [1, 1]} : vector<1x256xf32> to vector<1x64xf32>
    %166 = vector.extract_strided_slice %163 {offsets = [0, 64], sizes = [1, 64], strides = [1, 1]} : vector<1x256xf32> to vector<1x64xf32>
    %167 = vector.extract_strided_slice %164 {offsets = [0, 128], sizes = [1, 64], strides = [1, 1]} : vector<1x256xf32> to vector<1x64xf32>
    %168 = vector.extract_strided_slice %163 {offsets = [0, 192], sizes = [1, 64], strides = [1, 1]} : vector<1x256xf32> to vector<1x64xf32>
    %169 = arith.mulf %166, %150 : vector<1x64xf32>
    %170 = arith.mulf %165, %167 : vector<1x64xf32>
    %171 = arith.addf %169, %170 : vector<1x64xf32>
    %172 = math.tanh %171 : vector<1x64xf32>
    %173 = arith.mulf %168, %172 : vector<1x64xf32>
    %174 = vector.extract_strided_slice %173 {offsets = [0, 0], sizes = [1, 32], strides = [1, 1]} : vector<1x64xf32> to vector<1x32xf32>
    %c4_62 = arith.constant 4 : index
    %c0_63 = arith.constant 0 : index
    %175 = vector.load %arg7[%c4_62, %c0_63] : memref<8x64xf32, #tpu.memory_space<vmem>>, vector<1x32xf32>
    tpu.vector_store %arg7[%c4_62, %c0_63], %174 {strides = array<i32>} : memref<8x64xf32, #tpu.memory_space<vmem>>, vector<1x32xf32>,
    %176 = vector.extract_strided_slice %173 {offsets = [0, 32], sizes = [1, 32], strides = [1, 1]} : vector<1x64xf32> to vector<1x32xf32>
    %c3_64 = arith.constant 3 : index
    %c32_65 = arith.constant 32 : index
    %177 = vector.load %arg7[%c3_64, %c32_65] : memref<8x64xf32, #tpu.memory_space<vmem>>, vector<1x32xf32>
    tpu.vector_store %arg7[%c3_64, %c32_65], %176 {strides = array<i32>} : memref<8x64xf32, #tpu.memory_space<vmem>>, vector<1x32xf32>,
    %cst_66 = arith.constant dense<0.000000e+00> : vector<1x256xf32>
    %178 = tpu.matmul %173, %70, %cst_66 {dimension_numbers = #tpu.dot_dimension_numbers<[1], [0], [0], [1], [0, 0, 1, 1], [], []>} : vector<1x64xf32>, vector<64x256xf32>, vector<1x256xf32> -> vector<1x256xf32>
    %179 = arith.addf %61, %178 : vector<1x256xf32>
    %180 = arith.negf %179 : vector<1x256xf32>
    %181 = math.exp %180 : vector<1x256xf32>
    %cst_67 = arith.constant 1.000000e+00 : f32
    %182 = vector.broadcast %cst_67 : f32 to vector<1x256xf32>
    %183 = arith.addf %182, %181 : vector<1x256xf32>
    %184 = arith.divf %182, %183 : vector<1x256xf32>
    %185 = math.tanh %179 : vector<1x256xf32>
    %186 = vector.extract_strided_slice %184 {offsets = [0, 0], sizes = [1, 64], strides = [1, 1]} : vector<1x256xf32> to vector<1x64xf32>
    %187 = vector.extract_strided_slice %184 {offsets = [0, 64], sizes = [1, 64], strides = [1, 1]} : vector<1x256xf32> to vector<1x64xf32>
    %188 = vector.extract_strided_slice %185 {offsets = [0, 128], sizes = [1, 64], strides = [1, 1]} : vector<1x256xf32> to vector<1x64xf32>
    %189 = vector.extract_strided_slice %184 {offsets = [0, 192], sizes = [1, 64], strides = [1, 1]} : vector<1x256xf32> to vector<1x64xf32>
    %190 = arith.mulf %187, %171 : vector<1x64xf32>
    %191 = arith.mulf %186, %188 : vector<1x64xf32>
    %192 = arith.addf %190, %191 : vector<1x64xf32>
    %193 = math.tanh %192 : vector<1x64xf32>
    %194 = arith.mulf %189, %193 : vector<1x64xf32>
    %195 = vector.extract_strided_slice %194 {offsets = [0, 0], sizes = [1, 32], strides = [1, 1]} : vector<1x64xf32> to vector<1x32xf32>
    %c5_68 = arith.constant 5 : index
    %c0_69 = arith.constant 0 : index
    %196 = vector.load %arg7[%c5_68, %c0_69] : memref<8x64xf32, #tpu.memory_space<vmem>>, vector<1x32xf32>
    tpu.vector_store %arg7[%c5_68, %c0_69], %195 {strides = array<i32>} : memref<8x64xf32, #tpu.memory_space<vmem>>, vector<1x32xf32>,
    %197 = vector.extract_strided_slice %194 {offsets = [0, 32], sizes = [1, 32], strides = [1, 1]} : vector<1x64xf32> to vector<1x32xf32>
    %c2_70 = arith.constant 2 : index
    %c32_71 = arith.constant 32 : index
    %198 = vector.load %arg7[%c2_70, %c32_71] : memref<8x64xf32, #tpu.memory_space<vmem>>, vector<1x32xf32>
    tpu.vector_store %arg7[%c2_70, %c32_71], %197 {strides = array<i32>} : memref<8x64xf32, #tpu.memory_space<vmem>>, vector<1x32xf32>,
    %cst_72 = arith.constant dense<0.000000e+00> : vector<1x256xf32>
    %199 = tpu.matmul %194, %70, %cst_72 {dimension_numbers = #tpu.dot_dimension_numbers<[1], [0], [0], [1], [0, 0, 1, 1], [], []>} : vector<1x64xf32>, vector<64x256xf32>, vector<1x256xf32> -> vector<1x256xf32>
    %200 = arith.addf %65, %199 : vector<1x256xf32>
    %201 = arith.negf %200 : vector<1x256xf32>
    %202 = math.exp %201 : vector<1x256xf32>
    %cst_73 = arith.constant 1.000000e+00 : f32
    %203 = vector.broadcast %cst_73 : f32 to vector<1x256xf32>
    %204 = arith.addf %203, %202 : vector<1x256xf32>
    %205 = arith.divf %203, %204 : vector<1x256xf32>
    %206 = math.tanh %200 : vector<1x256xf32>
    %207 = vector.extract_strided_slice %205 {offsets = [0, 0], sizes = [1, 64], strides = [1, 1]} : vector<1x256xf32> to vector<1x64xf32>
    %208 = vector.extract_strided_slice %205 {offsets = [0, 64], sizes = [1, 64], strides = [1, 1]} : vector<1x256xf32> to vector<1x64xf32>
    %209 = vector.extract_strided_slice %206 {offsets = [0, 128], sizes = [1, 64], strides = [1, 1]} : vector<1x256xf32> to vector<1x64xf32>
    %210 = vector.extract_strided_slice %205 {offsets = [0, 192], sizes = [1, 64], strides = [1, 1]} : vector<1x256xf32> to vector<1x64xf32>
    %211 = arith.mulf %208, %192 : vector<1x64xf32>
    %212 = arith.mulf %207, %209 : vector<1x64xf32>
    %213 = arith.addf %211, %212 : vector<1x64xf32>
    %214 = math.tanh %213 : vector<1x64xf32>
    %215 = arith.mulf %210, %214 : vector<1x64xf32>
    %216 = vector.extract_strided_slice %215 {offsets = [0, 0], sizes = [1, 32], strides = [1, 1]} : vector<1x64xf32> to vector<1x32xf32>
    %c6_74 = arith.constant 6 : index
    %c0_75 = arith.constant 0 : index
    %217 = vector.load %arg7[%c6_74, %c0_75] : memref<8x64xf32, #tpu.memory_space<vmem>>, vector<1x32xf32>
    tpu.vector_store %arg7[%c6_74, %c0_75], %216 {strides = array<i32>} : memref<8x64xf32, #tpu.memory_space<vmem>>, vector<1x32xf32>,
    %218 = vector.extract_strided_slice %215 {offsets = [0, 32], sizes = [1, 32], strides = [1, 1]} : vector<1x64xf32> to vector<1x32xf32>
    %c1_76 = arith.constant 1 : index
    %c32_77 = arith.constant 32 : index
    %219 = vector.load %arg7[%c1_76, %c32_77] : memref<8x64xf32, #tpu.memory_space<vmem>>, vector<1x32xf32>
    tpu.vector_store %arg7[%c1_76, %c32_77], %218 {strides = array<i32>} : memref<8x64xf32, #tpu.memory_space<vmem>>, vector<1x32xf32>,
    %cst_78 = arith.constant dense<0.000000e+00> : vector<1x256xf32>
    %220 = tpu.matmul %215, %70, %cst_78 {dimension_numbers = #tpu.dot_dimension_numbers<[1], [0], [0], [1], [0, 0, 1, 1], [], []>} : vector<1x64xf32>, vector<64x256xf32>, vector<1x256xf32> -> vector<1x256xf32>
    %221 = arith.addf %69, %220 : vector<1x256xf32>
    %222 = arith.negf %221 : vector<1x256xf32>
    %223 = math.exp %222 : vector<1x256xf32>
    %cst_79 = arith.constant 1.000000e+00 : f32
    %224 = vector.broadcast %cst_79 : f32 to vector<1x256xf32>
    %225 = arith.addf %224, %223 : vector<1x256xf32>
    %226 = arith.divf %224, %225 : vector<1x256xf32>
    %227 = math.tanh %221 : vector<1x256xf32>
    %228 = vector.extract_strided_slice %226 {offsets = [0, 0], sizes = [1, 64], strides = [1, 1]} : vector<1x256xf32> to vector<1x64xf32>
    %229 = vector.extract_strided_slice %226 {offsets = [0, 64], sizes = [1, 64], strides = [1, 1]} : vector<1x256xf32> to vector<1x64xf32>
    %230 = vector.extract_strided_slice %227 {offsets = [0, 128], sizes = [1, 64], strides = [1, 1]} : vector<1x256xf32> to vector<1x64xf32>
    %231 = vector.extract_strided_slice %226 {offsets = [0, 192], sizes = [1, 64], strides = [1, 1]} : vector<1x256xf32> to vector<1x64xf32>
    %232 = arith.mulf %229, %213 : vector<1x64xf32>
    %233 = arith.mulf %228, %230 : vector<1x64xf32>
    %234 = arith.addf %232, %233 : vector<1x64xf32>
    %235 = math.tanh %234 : vector<1x64xf32>
    %236 = arith.mulf %231, %235 : vector<1x64xf32>
    %237 = vector.extract_strided_slice %236 {offsets = [0, 0], sizes = [1, 32], strides = [1, 1]} : vector<1x64xf32> to vector<1x32xf32>
    %c7_80 = arith.constant 7 : index
    %c0_81 = arith.constant 0 : index
    %238 = vector.load %arg7[%c7_80, %c0_81] : memref<8x64xf32, #tpu.memory_space<vmem>>, vector<1x32xf32>
    tpu.vector_store %arg7[%c7_80, %c0_81], %237 {strides = array<i32>} : memref<8x64xf32, #tpu.memory_space<vmem>>, vector<1x32xf32>,
    %239 = vector.extract_strided_slice %236 {offsets = [0, 32], sizes = [1, 32], strides = [1, 1]} : vector<1x64xf32> to vector<1x32xf32>
    %c0_82 = arith.constant 0 : index
    %c32_83 = arith.constant 32 : index
    %240 = vector.load %arg7[%c0_82, %c32_83] : memref<8x64xf32, #tpu.memory_space<vmem>>, vector<1x32xf32>
    tpu.vector_store %arg7[%c0_82, %c32_83], %239 {strides = array<i32>} : memref<8x64xf32, #tpu.memory_space<vmem>>, vector<1x32xf32>,
    %241 = vector.extract_strided_slice %236 {offsets = [0, 0], sizes = [1, 32], strides = [1, 1]} : vector<1x64xf32> to vector<1x32xf32>
    %c0_84 = arith.constant 0 : index
    %c0_85 = arith.constant 0 : index
    %242 = vector.load %arg8[%c0_84, %c0_85] : memref<2x32xf32, #tpu.memory_space<vmem>>, vector<1x32xf32>
    tpu.vector_store %arg8[%c0_84, %c0_85], %241 {strides = array<i32>} : memref<2x32xf32, #tpu.memory_space<vmem>>, vector<1x32xf32>,
    %243 = vector.extract_strided_slice %236 {offsets = [0, 32], sizes = [1, 32], strides = [1, 1]} : vector<1x64xf32> to vector<1x32xf32>
    %c1_86 = arith.constant 1 : index
    %c0_87 = arith.constant 0 : index
    %244 = vector.load %arg8[%c1_86, %c0_87] : memref<2x32xf32, #tpu.memory_space<vmem>>, vector<1x32xf32>
    tpu.vector_store %arg8[%c1_86, %c0_87], %243 {strides = array<i32>} : memref<2x32xf32, #tpu.memory_space<vmem>>, vector<1x32xf32>,
    %245 = vector.extract_strided_slice %234 {offsets = [0, 0], sizes = [1, 32], strides = [1, 1]} : vector<1x64xf32> to vector<1x32xf32>
    %c0_88 = arith.constant 0 : index
    %c0_89 = arith.constant 0 : index
    %246 = vector.load %arg9[%c0_88, %c0_89] : memref<2x32xf32, #tpu.memory_space<vmem>>, vector<1x32xf32>
    tpu.vector_store %arg9[%c0_88, %c0_89], %245 {strides = array<i32>} : memref<2x32xf32, #tpu.memory_space<vmem>>, vector<1x32xf32>,
    %247 = vector.extract_strided_slice %234 {offsets = [0, 32], sizes = [1, 32], strides = [1, 1]} : vector<1x64xf32> to vector<1x32xf32>
    %c1_90 = arith.constant 1 : index
    %c0_91 = arith.constant 0 : index
    %248 = vector.load %arg9[%c1_90, %c0_91] : memref<2x32xf32, #tpu.memory_space<vmem>>, vector<1x32xf32>
    tpu.vector_store %arg9[%c1_90, %c0_91], %247 {strides = array<i32>} : memref<2x32xf32, #tpu.memory_space<vmem>>, vector<1x32xf32>,
    return
  }
  func.func @transform_0(%arg0: i32, %arg1: memref<8xi32, #tpu.memory_space<smem>>) -> (i32, i32) {
    %c0_i32 = arith.constant 0 : i32
    %c0_i32_0 = arith.constant 0 : i32
    %c0_i32_1 = arith.constant 0 : i32
    return %c0_i32, %c0_i32_0 : i32, i32
  }
  func.func @transform_1(%arg0: i32, %arg1: memref<8xi32, #tpu.memory_space<smem>>) -> (i32, i32) {
    %c0_i32 = arith.constant 0 : i32
    %c0_i32_0 = arith.constant 0 : i32
    %c0_i32_1 = arith.constant 0 : i32
    return %c0_i32, %c0_i32_0 : i32, i32
  }
  func.func @transform_2(%arg0: i32, %arg1: memref<8xi32, #tpu.memory_space<smem>>) -> (i32, i32) {
    %c0_i32 = arith.constant 0 : i32
    %c0_i32_0 = arith.constant 0 : i32
    %c0_i32_1 = arith.constant 0 : i32
    return %c0_i32, %c0_i32_0 : i32, i32
  }
  func.func @transform_3(%arg0: i32, %arg1: memref<8xi32, #tpu.memory_space<smem>>) -> (i32, i32) {
    %c0_i32 = arith.constant 0 : i32
    %c0_i32_0 = arith.constant 0 : i32
    %c0_i32_1 = arith.constant 0 : i32
    return %c0_i32, %c0_i32_0 : i32, i32
  }
  func.func @transform_4(%arg0: i32, %arg1: memref<8xi32, #tpu.memory_space<smem>>) -> (i32, i32) {
    %c0_i32 = arith.constant 0 : i32
    %c0_i32_0 = arith.constant 0 : i32
    %c0_i32_1 = arith.constant 0 : i32
    return %c0_i32, %c0_i32_0 : i32, i32
  }
  func.func @transform_5(%arg0: i32, %arg1: memref<8xi32, #tpu.memory_space<smem>>) -> (i32, i32) {
    %c0_i32 = arith.constant 0 : i32
    %c0_i32_0 = arith.constant 0 : i32
    %c0_i32_1 = arith.constant 0 : i32
    return %c0_i32, %c0_i32_0 : i32, i32
  }
  func.func @transform_6(%arg0: i32, %arg1: memref<8xi32, #tpu.memory_space<smem>>) -> (i32, i32) {
    %c0_i32 = arith.constant 0 : i32
    %c0_i32_0 = arith.constant 0 : i32
    %c0_i32_1 = arith.constant 0 : i32
    return %c0_i32, %c0_i32_0 : i32, i32
  }
  func.func @transform_7(%arg0: i32, %arg1: memref<8xi32, #tpu.memory_space<smem>>) -> (i32, i32) {
    %c0_i32 = arith.constant 0 : i32
    %c0_i32_0 = arith.constant 0 : i32
    %c0_i32_1 = arith.constant 0 : i32
    return %c0_i32, %c0_i32_0 : i32, i32
  }
}

</mosaic_0001>

<llo_original>
// kernel: _encoder_forward.1
$region0: #{_encoder_forward.1}
  #allocation0 [shape = 'u32[]', space=smem, size = 0x4, offset = 0x4, fixed_abs, tag = 'smem constant byte address 0x4 - core index']
  #allocation1 [shape = 'u32[144,128]{1,0:T(1,128)}', space=vmem, size = 0x12000, scoped, tag = 'internal scratch']
  #allocation2 [shape = 'f32[8,32]{1,0:T(8,128)}', space=vmem, size = 0x1000, scoped, tag = 'scratch operand']
  #allocation3 [shape = 's32[1]{0}', space=sflag, size = 0x4, scoped, tag = 'scoped memory for _encoder_forward.1']
  #allocation4 [shape = 'u8[512]{0}', space=smem, size = 0x200, scoped, tag = 'prefetched SMEM operand 0']
  %s0 = inlined_call_operand.vmem [shape: s32[8], index: 0, kind: input, shape index: {}]
  %s1 = inlined_call_operand.vmem [shape: f32[90,32], index: 1, kind: input, shape index: {}]
  %s2 = inlined_call_operand.hbm [shape: f32[32,256], index: 2, kind: input, shape index: {}]
  %s3 = inlined_call_operand.hbm [shape: f32[32,256], index: 3, kind: input, shape index: {}]
  %s4 = inlined_call_operand.vmem [shape: f32[64,256], index: 4, kind: input, shape index: {}]
  %s5 = inlined_call_operand.vmem [shape: f32[1,256], index: 5, kind: input, shape index: {}]
  %s6 = inlined_call_operand.hbm [shape: f32[8,64], index: 6, kind: output, shape index: {0}]
  %s7 = inlined_call_operand.hbm [shape: f32[2,32], index: 7, kind: output, shape index: {1}]
  %s8 = inlined_call_operand.hbm [shape: f32[2,32], index: 8, kind: output, shape index: {2}]
  %9 = xla_tuple %s6, %s7, %s8
  %s10 = sld [smem:[#allocation0]]
  $region54: #{_encoder_forward.1} parent=0
    _
  %s12 = ssub.s32 1, %s10
  %s13 = scalar_select 0, %s12, %s10
  %s14 = sshll.u32 %s0, 4
  %s15 = int_to_ptr.vmem [resolvable:$true] %s14
  %17 = dma.vmem_to_smem %s15, 16, [#allocation4], [#allocation3]
  %18 = dma.done [#allocation3], 16
  %19 = sfence
  $region1: #{_encoder_forward.1} parent=0
    #allocation5 [shape = 'u8[32768]{0}', space=vmem, size = 0x8000, scoped, tag = 'input window, operand 2, single buffered']
    #allocation6 [shape = 's32[1]{0}', space=sflag, size = 0x4, scoped, tag = 'scoped memory for _encoder_forward.1']
    #allocation7 [shape = 's32[1]{0}', space=sflag, size = 0x4, scoped, tag = 'scoped memory for _encoder_forward.1']
    #allocation8 [shape = 'u8[32768]{0}', space=vmem, size = 0x8000, scoped, tag = 'input window, operand 3, single buffered']
    #allocation9 [shape = 's32[1]{0}', space=sflag, size = 0x4, scoped, tag = 'scoped memory for _encoder_forward.1']
    #allocation10 [shape = 'u8[4096]{0}', space=vmem, size = 0x1000, scoped, tag = 'output window, operand 0, single buffered']
    #allocation11 [shape = 'u8[1024]{0}', space=vmem, size = 0x400, scoped, tag = 'output window, operand 1, single buffered']
    #allocation12 [shape = 's32[1]{0}', space=sflag, size = 0x4, scoped, tag = 'scoped memory for _encoder_forward.1']
    #allocation13 [shape = 'u8[1024]{0}', space=vmem, size = 0x400, scoped, tag = 'output window, operand 2, single buffered']
    %20 = vsyncpa [#allocation6], 0
    %21 = vsyncpa [#allocation9], 0
    %22 = vsyncpa [#allocation7], 0
    %23 = vsyncpa [#allocation12], 0
    // Predicated region
    $region2: #{_encoder_forward.1} parent=1 // pred_check
      _
    $region3: #{_encoder_forward.1} parent=1 // pred_check_branch
      %25 = sbr.rel (0) target = $region5
    $region4: #{_encoder_forward.1} parent=1 // pred_region
      _
    $region5: #{_encoder_forward.1} parent=1 // pred_fallthru
      _
    // Predicated region
    $region6: #{_encoder_forward.1} parent=1 // pred_check
      _
    $region7: #{_encoder_forward.1} parent=1 // pred_check_branch
      %27 = sbr.rel (0) target = $region9
    $region8: #{_encoder_forward.1} parent=1 // pred_region
      %s29 = ssub.s32 1024, 1024
      %30 = vsyncadd [#allocation6], %s29
      %s31 = sshll.u32 [#allocation5], 4
      %s32 = int_to_ptr.vmem [resolvable:$true] %s31
      %37 = dma.hbm_to_vmem [thread:$0]  %s2, 1024, %s32, [#allocation6], 256, 256, 16
    $region9: #{_encoder_forward.1} parent=1 // pred_fallthru
      _
    // Predicated region
    $region10: #{_encoder_forward.1} parent=1 // pred_check
      _
    $region11: #{_encoder_forward.1} parent=1 // pred_check_branch
      %39 = sbr.rel (0) target = $region13
    $region12: #{_encoder_forward.1} parent=1 // pred_region
      %s41 = ssub.s32 1024, 1024
      %42 = vsyncadd [#allocation9], %s41
      %s43 = sshll.u32 [#allocation8], 4
      %s44 = int_to_ptr.vmem [resolvable:$true] %s43
      %49 = dma.hbm_to_vmem [thread:$0]  %s3, 1024, %s44, [#allocation9], 256, 256, 16
    $region13: #{_encoder_forward.1} parent=1 // pred_fallthru
      _
    // Predicated region
    $region14: #{_encoder_forward.1} parent=1 // pred_check
      _
    $region15: #{_encoder_forward.1} parent=1 // pred_check_branch
      %51 = sbr.rel (0) target = $region17
    $region16: #{_encoder_forward.1} parent=1 // pred_region
      _
    $region17: #{_encoder_forward.1} parent=1 // pred_fallthru
      _
    // Predicated region
    $region18: #{_encoder_forward.1} parent=1 // pred_check
      _
    $region19: #{_encoder_forward.1} parent=1 // pred_check_branch
      %53 = sbr.rel (0) target = $region21
    $region20: #{_encoder_forward.1} parent=1 // pred_region
      _
    $region21: #{_encoder_forward.1} parent=1 // pred_fallthru
      _
    // Predicated region
    $region22: #{_encoder_forward.1} parent=1 // pred_check
      _
    $region23: #{_encoder_forward.1} parent=1 // pred_check_branch
      %55 = sbr.rel (0) target = $region25
    $region24: #{_encoder_forward.1} parent=1 // pred_region
      %56 = dma.done [#allocation6], 1024
    $region25: #{_encoder_forward.1} parent=1 // pred_fallthru
      _
    // Predicated region
    $region26: #{_encoder_forward.1} parent=1 // pred_check
      _
    $region27: #{_encoder_forward.1} parent=1 // pred_check_branch
      %58 = sbr.rel (0) target = $region29
    $region28: #{_encoder_forward.1} parent=1 // pred_region
      %59 = dma.done [#allocation9], 1024
    $region29: #{_encoder_forward.1} parent=1 // pred_fallthru
      _
    %s60 = sld [smem:[#allocation4]]
    %s61 = scalar_lea.vmem %s1, %s60
    %v62 = vld [vmem:[%s61] sm:$0x1]
    %vm63 = vcmask 253952
    %64 = vst.msk [vmem:[#allocation2] sm:$0x1] %vm63, %v62
    %s65 = sld [smem:[#allocation4 + $0x1]]
    %s66 = scalar_lea.vmem %s1, %s65
    %v67 = vld [vmem:[%s66] sm:$0x1]
    %68 = vst.msk [vmem:[#allocation2 + $0x1] sm:$0x1] %vm63, %v67
    %s69 = sld [smem:[#allocation4 + $0x2]]
    %s70 = scalar_lea.vmem %s1, %s69
    %v71 = vld [vmem:[%s70] sm:$0x1]
    %72 = vst.msk [vmem:[#allocation2 + $0x2] sm:$0x1] %vm63, %v71
    %s73 = sld [smem:[#allocation4 + $0x3]]
    %s74 = scalar_lea.vmem %s1, %s73
    %v75 = vld [vmem:[%s74] sm:$0x1]
    %76 = vst.msk [vmem:[#allocation2 + $0x3] sm:$0x1] %vm63, %v75
    %s77 = sld [smem:[#allocation4 + $0x4]]
    %s78 = scalar_lea.vmem %s1, %s77
    %v79 = vld [vmem:[%s78] sm:$0x1]
    %80 = vst.msk [vmem:[#allocation2 + $0x4] sm:$0x1] %vm63, %v79
    %s81 = sld [smem:[#allocation4 + $0x5]]
    %s82 = scalar_lea.vmem %s1, %s81
    %v83 = vld [vmem:[%s82] sm:$0x1]
    %84 = vst.msk [vmem:[#allocation2 + $0x5] sm:$0x1] %vm63, %v83
    %s85 = sld [smem:[#allocation4 + $0x6]]
    %s86 = scalar_lea.vmem %s1, %s85
    %v87 = vld [vmem:[%s86] sm:$0x1]
    %88 = vst.msk [vmem:[#allocation2 + $0x6] sm:$0x1] %vm63, %v87
    %s89 = sld [smem:[#allocation4 + $0x7]]
    %s90 = scalar_lea.vmem %s1, %s89
    %v91 = vld [vmem:[%s90] sm:$0x1]
    %92 = vst.msk [vmem:[#allocation2 + $0x7] sm:$0x1] %vm63, %v91
    %v93 = vld [vmem:[#allocation2] sm:$0xff]
    %v94 = vld [vmem:[#allocation5] sm:$0xff]
    %v95 = vld [vmem:[#allocation5 + $0x8] sm:$0xff]
    %v96 = vld [vmem:[#allocation5 + $0x10] sm:$0xff]
    %v97 = vld [vmem:[#allocation5 + $0x18] sm:$0xff]
    %v98 = vld [vmem:[#allocation5 + $0x20] sm:$0xff]
    %v99 = vld [vmem:[#allocation5 + $0x28] sm:$0xff]
    %v100 = vld [vmem:[#allocation5 + $0x30] sm:$0xff]
    %v101 = vld [vmem:[#allocation5 + $0x38] sm:$0xff]
    %vm102 = vcmask 261120
    %v104 = vsel %vm102, %v93, 0
    %106 = vmatprep.subr.mxu0 0.0
    %107 = vmatpush1.msra.mxu0 0.0
    %108 = vmatprep.subr.mxu0 0.0
    %109 = vmatpush1.msra.mxu0 0.0
    %110 = vmatprep.subr.mxu0 0.0
    %111 = vmatpush1.msra.mxu0 0.0
    %112 = vmatprep.subr.mxu0 0.0
    %113 = vmatpush1.msra.mxu0 0.0
    %114 = vmatprep.subr.mxu0 0.0
    %115 = vmatpush1.msra.mxu0 0.0
    %116 = vmatprep.subr.mxu0 0.0
    %117 = vmatpush1.msra.mxu0 0.0
    %118 = vmatprep.subr.mxu0 0.0
    %119 = vmatpush1.msra.mxu0 0.0
    %120 = vmatprep.subr.mxu0 0.0
    %121 = vmatpush1.msra.mxu0 0.0
    %122 = vmatprep.subr.mxu0 0.0
    %123 = vmatpush1.msra.mxu0 0.0
    %124 = vmatprep.subr.mxu0 0.0
    %125 = vmatpush1.msra.mxu0 0.0
    %126 = vmatprep.subr.mxu0 0.0
    %127 = vmatpush1.msra.mxu0 0.0
    %128 = vmatprep.subr.mxu0 0.0
    %129 = vmatpush1.msra.mxu0 0.0
    %130 = vmatprep.subr.mxu0 %v101
    %131 = vmatpush1.msra.mxu0 %v100
    %132 = vmatprep.subr.mxu0 %v99
    %133 = vmatpush1.msra.mxu0 %v98
    %134 = vmatprep.subr.mxu0 %v97
    %135 = vmatpush1.msra.mxu0 %v96
    %136 = vmatprep.subr.mxu0 %v95
    %137 = vmatpush1.msra.mxu0 %v94
    %138 = vmatprep.subr.mxu0 0.0
    %139 = vmatpush2.msra.mxu0 0.0
    %140 = vmatprep.subr.mxu0 0.0
    %141 = vmatpush2.msra.mxu0 0.0
    %142 = vmatprep.subr.mxu0 0.0
    %143 = vmatpush2.msra.mxu0 0.0
    %144 = vmatprep.subr.mxu0 0.0
    %145 = vmatpush2.msra.mxu0 0.0
    %146 = vmatprep.subr.mxu0 0.0
    %147 = vmatpush2.msra.mxu0 0.0
    %148 = vmatprep.subr.mxu0 0.0
    %149 = vmatpush2.msra.mxu0 0.0
    %150 = vmatprep.subr.mxu0 0.0
    %151 = vmatpush2.msra.mxu0 0.0
    %152 = vmatprep.subr.mxu0 0.0
    %153 = vmatpush2.msra.mxu0 0.0
    %154 = vmatprep.subr.mxu0 0.0
    %155 = vmatpush2.msra.mxu0 0.0
    %156 = vmatprep.subr.mxu0 0.0
    %157 = vmatpush2.msra.mxu0 0.0
    %158 = vmatprep.subr.mxu0 0.0
    %159 = vmatpush2.msra.mxu0 0.0
    %160 = vmatprep.subr.mxu0 0.0
    %161 = vmatpush2.msra.mxu0 0.0
    %162 = vmatprep.subr.mxu0 0.0
    %163 = vmatpush2.msra.mxu0 0.0
    %164 = vmatprep.subr.mxu0 0.0
    %165 = vmatpush2.msra.mxu0 0.0
    %166 = vmatprep.subr.mxu0 0.0
    %167 = vmatpush2.msra.mxu0 0.0
    %168 = vmatprep.subr.mxu0 0.0
    %169 = vmatpush2.msra.mxu0 0.0
    %170 = vmatprep.mubr.f32.mxu0 0.0
    %171 = vmatmul.mubr.f32.gmra.mxu0 %v104
    %v172 = vpop.f32.mrf.mxu0
    %v173 = vadd.f32 0.0, %v172
    %v174 = vpop.f32.mrf.mxu0
    %v175 = vadd.f32 0.0, %v174
    %176 = vdwg.mxu0
    %v177 = vld [vmem:[#allocation8] sm:$0xff]
    %v178 = vld [vmem:[#allocation8 + $0x8] sm:$0xff]
    %v179 = vld [vmem:[#allocation8 + $0x10] sm:$0xff]
    %v180 = vld [vmem:[#allocation8 + $0x18] sm:$0xff]
    %v181 = vld [vmem:[#allocation8 + $0x20] sm:$0xff]
    %v182 = vld [vmem:[#allocation8 + $0x28] sm:$0xff]
    %v183 = vld [vmem:[#allocation8 + $0x30] sm:$0xff]
    %v184 = vld [vmem:[#allocation8 + $0x38] sm:$0xff]
    %185 = vmatprep.subr.mxu0 0.0
    %186 = vmatpush1.msra.mxu0 0.0
    %187 = vmatprep.subr.mxu0 0.0
    %188 = vmatpush1.msra.mxu0 0.0
    %189 = vmatprep.subr.mxu0 0.0
    %190 = vmatpush1.msra.mxu0 0.0
    %191 = vmatprep.subr.mxu0 0.0
    %192 = vmatpush1.msra.mxu0 0.0
    %193 = vmatprep.subr.mxu0 0.0
    %194 = vmatpush1.msra.mxu0 0.0
    %195 = vmatprep.subr.mxu0 0.0
    %196 = vmatpush1.msra.mxu0 0.0
    %197 = vmatprep.subr.mxu0 0.0
    %198 = vmatpush1.msra.mxu0 0.0
    %199 = vmatprep.subr.mxu0 0.0
    %200 = vmatpush1.msra.mxu0 0.0
    %201 = vmatprep.subr.mxu0 0.0
    %202 = vmatpush1.msra.mxu0 0.0
    %203 = vmatprep.subr.mxu0 0.0
    %204 = vmatpush1.msra.mxu0 0.0
    %205 = vmatprep.subr.mxu0 0.0
    %206 = vmatpush1.msra.mxu0 0.0
    %207 = vmatprep.subr.mxu0 0.0
    %208 = vmatpush1.msra.mxu0 0.0
    %209 = vmatprep.subr.mxu0 %v184
    %210 = vmatpush1.msra.mxu0 %v183
    %211 = vmatprep.subr.mxu0 %v182
    %212 = vmatpush1.msra.mxu0 %v181
    %213 = vmatprep.subr.mxu0 %v180
    %214 = vmatpush1.msra.mxu0 %v179
    %215 = vmatprep.subr.mxu0 %v178
    %216 = vmatpush1.msra.mxu0 %v177
    %217 = vmatprep.subr.mxu0 0.0
    %218 = vmatpush2.msra.mxu0 0.0
    %219 = vmatprep.subr.mxu0 0.0
    %220 = vmatpush2.msra.mxu0 0.0
    %221 = vmatprep.subr.mxu0 0.0
    %222 = vmatpush2.msra.mxu0 0.0
    %223 = vmatprep.subr.mxu0 0.0
    %224 = vmatpush2.msra.mxu0 0.0
    %225 = vmatprep.subr.mxu0 0.0
    %226 = vmatpush2.msra.mxu0 0.0
    %227 = vmatprep.subr.mxu0 0.0
    %228 = vmatpush2.msra.mxu0 0.0
    %229 = vmatprep.subr.mxu0 0.0
    %230 = vmatpush2.msra.mxu0 0.0
    %231 = vmatprep.subr.mxu0 0.0
    %232 = vmatpush2.msra.mxu0 0.0
    %233 = vmatprep.subr.mxu0 0.0
    %234 = vmatpush2.msra.mxu0 0.0
    %235 = vmatprep.subr.mxu0 0.0
    %236 = vmatpush2.msra.mxu0 0.0
    %237 = vmatprep.subr.mxu0 0.0
    %238 = vmatpush2.msra.mxu0 0.0
    %239 = vmatprep.subr.mxu0 0.0
    %240 = vmatpush2.msra.mxu0 0.0
    %241 = vmatprep.subr.mxu0 0.0
    %242 = vmatpush2.msra.mxu0 0.0
    %243 = vmatprep.subr.mxu0 0.0
    %244 = vmatpush2.msra.mxu0 0.0
    %245 = vmatprep.subr.mxu0 0.0
    %246 = vmatpush2.msra.mxu0 0.0
    %247 = vmatprep.subr.mxu0 0.0
    %248 = vmatpush2.msra.mxu0 0.0
    %249 = vmatprep.mubr.f32.mxu0 0.0
    %250 = vmatmul.mubr.f32.gmra.mxu0 %v104
    %v251 = vpop.f32.mrf.mxu0
    %v252 = vadd.f32 0.0, %v251
    %v253 = vpop.f32.mrf.mxu0
    %v254 = vadd.f32 0.0, %v253
    %255 = vdwg.mxu0
    %v256 = vld [vmem:[%s5] sm:$0x3]
    %v259 = vrot.slane %v252, 7
    %v260 = vrot.slane %v254, 7
    %v263 = vadd.f32 %v173, %v259
    %v264 = vadd.f32 %v175, %v260
    %v266 = vlaneseq
    %v267 = vshrl.u32 %v266, 7
    %v268 = vsub.s32 0, %v267
    %v269 = vrot.slane %v256, %v268
    %v270 = vlaneseq
    %v271 = vshrl.u32 %v270, 7
    %v272 = vsub.s32 1, %v271
    %v273 = vrot.slane %v256, %v272
    %v276 = vadd.f32 %v263, %v269
    %v277 = vadd.f32 %v264, %v273
    %v278 = vrot.slane %v252, 5
    %v279 = vrot.slane %v254, 5
    %v282 = vadd.f32 %v173, %v278
    %v283 = vadd.f32 %v175, %v279
    %v284 = vadd.f32 %v282, %v269
    %v285 = vadd.f32 %v283, %v273
    %v286 = vrot.slane %v252, 3
    %v287 = vrot.slane %v254, 3
    %v290 = vadd.f32 %v173, %v286
    %v291 = vadd.f32 %v175, %v287
    %v292 = vadd.f32 %v290, %v269
    %v293 = vadd.f32 %v291, %v273
    %v294 = vrot.slane %v252, 1
    %v295 = vrot.slane %v254, 1
    %v298 = vadd.f32 %v173, %v294
    %v299 = vadd.f32 %v175, %v295
    %v300 = vadd.f32 %v298, %v269
    %v301 = vadd.f32 %v299, %v273
    %v302 = vld [vmem:[%s4] sm:$0xff]
    %v303 = vld [vmem:[%s4 + $0x8] sm:$0xff]
    %v304 = vld [vmem:[%s4 + $0x10] sm:$0xff]
    %v305 = vld [vmem:[%s4 + $0x18] sm:$0xff]
    %v306 = vld [vmem:[%s4 + $0x20] sm:$0xff]
    %v307 = vld [vmem:[%s4 + $0x28] sm:$0xff]
    %v308 = vld [vmem:[%s4 + $0x30] sm:$0xff]
    %v309 = vld [vmem:[%s4 + $0x38] sm:$0xff]
    %v310 = vld [vmem:[%s4 + $0x40] sm:$0xff]
    %v311 = vld [vmem:[%s4 + $0x48] sm:$0xff]
    %v312 = vld [vmem:[%s4 + $0x50] sm:$0xff]
    %v313 = vld [vmem:[%s4 + $0x58] sm:$0xff]
    %v314 = vld [vmem:[%s4 + $0x60] sm:$0xff]
    %v315 = vld [vmem:[%s4 + $0x68] sm:$0xff]
    %v316 = vld [vmem:[%s4 + $0x70] sm:$0xff]
    %v317 = vld [vmem:[%s4 + $0x78] sm:$0xff]
    %vm318 = vcmask 523264
    %v320 = vsel %vm318, 0.0, 0
    %322 = vmatprep.subr.mxu0 0.0
    %323 = vmatpush1.msra.mxu0 0.0
    %324 = vmatprep.subr.mxu0 0.0
    %325 = vmatpush1.msra.mxu0 0.0
    %326 = vmatprep.subr.mxu0 0.0
    %327 = vmatpush1.msra.mxu0 0.0
    %328 = vmatprep.subr.mxu0 0.0
    %329 = vmatpush1.msra.mxu0 0.0
    %330 = vmatprep.subr.mxu0 0.0
    %331 = vmatpush1.msra.mxu0 0.0
    %332 = vmatprep.subr.mxu0 0.0
    %333 = vmatpush1.msra.mxu0 0.0
    %334 = vmatprep.subr.mxu0 0.0
    %335 = vmatpush1.msra.mxu0 0.0
    %336 = vmatprep.subr.mxu0 0.0
    %337 = vmatpush1.msra.mxu0 0.0
    %338 = vmatprep.subr.mxu0 %v317
    %339 = vmatpush1.msra.mxu0 %v316
    %340 = vmatprep.subr.mxu0 %v315
    %341 = vmatpush1.msra.mxu0 %v314
    %342 = vmatprep.subr.mxu0 %v313
    %343 = vmatpush1.msra.mxu0 %v312
    %344 = vmatprep.subr.mxu0 %v311
    %345 = vmatpush1.msra.mxu0 %v310
    %346 = vmatprep.subr.mxu0 %v309
    %347 = vmatpush1.msra.mxu0 %v308
    %348 = vmatprep.subr.mxu0 %v307
    %349 = vmatpush1.msra.mxu0 %v306
    %350 = vmatprep.subr.mxu0 %v305
    %351 = vmatpush1.msra.mxu0 %v304
    %352 = vmatprep.subr.mxu0 %v303
    %353 = vmatpush1.msra.mxu0 %v302
    %354 = vmatprep.subr.mxu0 0.0
    %355 = vmatpush2.msra.mxu0 0.0
    %356 = vmatprep.subr.mxu0 0.0
    %357 = vmatpush2.msra.mxu0 0.0
    %358 = vmatprep.subr.mxu0 0.0
    %359 = vmatpush2.msra.mxu0 0.0
    %360 = vmatprep.subr.mxu0 0.0
    %361 = vmatpush2.msra.mxu0 0.0
    %362 = vmatprep.subr.mxu0 0.0
    %363 = vmatpush2.msra.mxu0 0.0
    %364 = vmatprep.subr.mxu0 0.0
    %365 = vmatpush2.msra.mxu0 0.0
    %366 = vmatprep.subr.mxu0 0.0
    %367 = vmatpush2.msra.mxu0 0.0
    %368 = vmatprep.subr.mxu0 0.0
    %369 = vmatpush2.msra.mxu0 0.0
    %370 = vmatprep.subr.mxu0 0.0
    %371 = vmatpush2.msra.mxu0 0.0
    %372 = vmatprep.subr.mxu0 0.0
    %373 = vmatpush2.msra.mxu0 0.0
    %374 = vmatprep.subr.mxu0 0.0
    %375 = vmatpush2.msra.mxu0 0.0
    %376 = vmatprep.subr.mxu0 0.0
    %377 = vmatpush2.msra.mxu0 0.0
    %378 = vmatprep.subr.mxu0 0.0
    %379 = vmatpush2.msra.mxu0 0.0
    %380 = vmatprep.subr.mxu0 0.0
    %381 = vmatpush2.msra.mxu0 0.0
    %382 = vmatprep.subr.mxu0 0.0
    %383 = vmatpush2.msra.mxu0 0.0
    %384 = vmatprep.subr.mxu0 0.0
    %385 = vmatpush2.msra.mxu0 0.0
    %386 = vmatprep.mubr.f32.mxu0 0.0
    %387 = vmatmul.mubr.f32.gmra.mxu0 %v320
    %v388 = vpop.f32.mrf.mxu0
    %v389 = vadd.f32 0.0, %v388
    %v390 = vpop.f32.mrf.mxu0
    %v391 = vadd.f32 0.0, %v390
    %392 = vdwg.mxu0
    %v393 = vadd.f32 %v276, %v389
    %v394 = vadd.f32 %v277, %v391
    %v395 = vxor.u32 %v393, 2147483648
    %v396 = vxor.u32 %v394, 2147483648
    %v397 = vmul.f32 %v395, 1.442695
    %v398 = vpow.pop %v397
    %v399 = vmul.f32 %v396, 1.442695
    %v400 = vpow.pop %v399
    %v401 = vadd.f32 %v398, 1.0
    %v402 = vadd.f32 %v400, 1.0
    %v403 = vrcp.pop %v401
    %v404 = vmul.f32 1.0, %v403
    %v405 = vrcp.pop %v402
    %v406 = vmul.f32 1.0, %v405
    %v407 = vtanh.pop %v394
    %v408 = vmul.f32 %v404, 0.0
    %v409 = vmul.f32 %v404, %v407
    %411 = vrot.lane.b32.xlu0 %v409, 64
    %v412 = vpop.permute.xlu0 %411
    %v414 = vadd.f32 %v408, %v412
    %v415 = vtanh.pop %v414
    %v416 = vmul.f32 %v406, %v415
    %418 = vrot.lane.b32.xlu0 %v416, 64
    %v419 = vpop.permute.xlu0 %418
    %421 = vst.msk [vmem:[#allocation10] sm:$0x1] %vm63, %v419
    %vm422 = vcmask 516352
    %423 = vst.msk [vmem:[#allocation10 + $0x7] sm:$0x1] %vm422, %v419
    %v424 = vsel %vm318, %v419, 0
    %426 = vmatprep.subr.mxu0 0.0
    %427 = vmatpush1.msra.mxu0 0.0
    %428 = vmatprep.subr.mxu0 0.0
    %429 = vmatpush1.msra.mxu0 0.0
    %430 = vmatprep.subr.mxu0 0.0
    %431 = vmatpush1.msra.mxu0 0.0
    %432 = vmatprep.subr.mxu0 0.0
    %433 = vmatpush1.msra.mxu0 0.0
    %434 = vmatprep.subr.mxu0 0.0
    %435 = vmatpush1.msra.mxu0 0.0
    %436 = vmatprep.subr.mxu0 0.0
    %437 = vmatpush1.msra.mxu0 0.0
    %438 = vmatprep.subr.mxu0 0.0
    %439 = vmatpush1.msra.mxu0 0.0
    %440 = vmatprep.subr.mxu0 0.0
    %441 = vmatpush1.msra.mxu0 0.0
    %442 = vmatprep.subr.mxu0 %v317
    %443 = vmatpush1.msra.mxu0 %v316
    %444 = vmatprep.subr.mxu0 %v315
    %445 = vmatpush1.msra.mxu0 %v314
    %446 = vmatprep.subr.mxu0 %v313
    %447 = vmatpush1.msra.mxu0 %v312
    %448 = vmatprep.subr.mxu0 %v311
    %449 = vmatpush1.msra.mxu0 %v310
    %450 = vmatprep.subr.mxu0 %v309
    %451 = vmatpush1.msra.mxu0 %v308
    %452 = vmatprep.subr.mxu0 %v307
    %453 = vmatpush1.msra.mxu0 %v306
    %454 = vmatprep.subr.mxu0 %v305
    %455 = vmatpush1.msra.mxu0 %v304
    %456 = vmatprep.subr.mxu0 %v303
    %457 = vmatpush1.msra.mxu0 %v302
    %458 = vmatprep.subr.mxu0 0.0
    %459 = vmatpush2.msra.mxu0 0.0
    %460 = vmatprep.subr.mxu0 0.0
    %461 = vmatpush2.msra.mxu0 0.0
    %462 = vmatprep.subr.mxu0 0.0
    %463 = vmatpush2.msra.mxu0 0.0
    %464 = vmatprep.subr.mxu0 0.0
    %465 = vmatpush2.msra.mxu0 0.0
    %466 = vmatprep.subr.mxu0 0.0
    %467 = vmatpush2.msra.mxu0 0.0
    %468 = vmatprep.subr.mxu0 0.0
    %469 = vmatpush2.msra.mxu0 0.0
    %470 = vmatprep.subr.mxu0 0.0
    %471 = vmatpush2.msra.mxu0 0.0
    %472 = vmatprep.subr.mxu0 0.0
    %473 = vmatpush2.msra.mxu0 0.0
    %474 = vmatprep.subr.mxu0 0.0
    %475 = vmatpush2.msra.mxu0 0.0
    %476 = vmatprep.subr.mxu0 0.0
    %477 = vmatpush2.msra.mxu0 0.0
    %478 = vmatprep.subr.mxu0 0.0
    %479 = vmatpush2.msra.mxu0 0.0
    %480 = vmatprep.subr.mxu0 0.0
    %481 = vmatpush2.msra.mxu0 0.0
    %482 = vmatprep.subr.mxu0 0.0
    %483 = vmatpush2.msra.mxu0 0.0
    %484 = vmatprep.subr.mxu0 0.0
    %485 = vmatpush2.msra.mxu0 0.0
    %486 = vmatprep.subr.mxu0 0.0
    %487 = vmatpush2.msra.mxu0 0.0
    %488 = vmatprep.subr.mxu0 0.0
    %489 = vmatpush2.msra.mxu0 0.0
    %490 = vmatprep.mubr.f32.mxu0 0.0
    %491 = vmatmul.mubr.f32.gmra.mxu0 %v424
    %v492 = vpop.f32.mrf.mxu0
    %v493 = vadd.f32 0.0, %v492
    %v494 = vpop.f32.mrf.mxu0
    %v495 = vadd.f32 0.0, %v494
    %496 = vdwg.mxu0
    %v499 = vrot.slane %v493, 7
    %v500 = vrot.slane %v495, 7
    %v503 = vadd.f32 %v284, %v499
    %v504 = vadd.f32 %v285, %v500
    %v505 = vxor.u32 %v503, 2147483648
    %v506 = vxor.u32 %v504, 2147483648
    %v507 = vmul.f32 %v505, 1.442695
    %v508 = vpow.pop %v507
    %v509 = vmul.f32 %v506, 1.442695
    %v510 = vpow.pop %v509
    %v511 = vadd.f32 %v508, 1.0
    %v512 = vadd.f32 %v510, 1.0
    %v513 = vrcp.pop %v511
    %v514 = vmul.f32 1.0, %v513
    %v515 = vrcp.pop %v512
    %v516 = vmul.f32 1.0, %v515
    %v517 = vtanh.pop %v504
    %v519 = vrot.slane %v414, 7
    %v521 = vmul.f32 %v514, %v519
    %v522 = vmul.f32 %v514, %v517
    %524 = vrot.lane.b32.xlu0 %v522, 64
    %v525 = vpop.permute.xlu0 %524
    %v527 = vadd.f32 %v521, %v525
    %v528 = vtanh.pop %v527
    %v529 = vmul.f32 %v516, %v528
    %531 = vrot.lane.b32.xlu0 %v529, 64
    %v532 = vpop.permute.xlu0 %531
    %vm534 = vcmask 254977
    %535 = vst.msk [vmem:[#allocation10] sm:$0x2] %vm534, %v532
    %vm536 = vcmask 517377
    %537 = vst.msk [vmem:[#allocation10 + $0x5] sm:$0x2] %vm536, %v532
    %v538 = vrot.slane %v529, 1
    %539 = vrot.lane.b32.xlu0 %v538, 64
    %v540 = vpop.permute.xlu0 %539
    %v541 = vsel %vm318, %v540, 0
    %543 = vmatprep.subr.mxu0 0.0
    %544 = vmatpush1.msra.mxu0 0.0
    %545 = vmatprep.subr.mxu0 0.0
    %546 = vmatpush1.msra.mxu0 0.0
    %547 = vmatprep.subr.mxu0 0.0
    %548 = vmatpush1.msra.mxu0 0.0
    %549 = vmatprep.subr.mxu0 0.0
    %550 = vmatpush1.msra.mxu0 0.0
    %551 = vmatprep.subr.mxu0 0.0
    %552 = vmatpush1.msra.mxu0 0.0
    %553 = vmatprep.subr.mxu0 0.0
    %554 = vmatpush1.msra.mxu0 0.0
    %555 = vmatprep.subr.mxu0 0.0
    %556 = vmatpush1.msra.mxu0 0.0
    %557 = vmatprep.subr.mxu0 0.0
    %558 = vmatpush1.msra.mxu0 0.0
    %559 = vmatprep.subr.mxu0 %v317
    %560 = vmatpush1.msra.mxu0 %v316
    %561 = vmatprep.subr.mxu0 %v315
    %562 = vmatpush1.msra.mxu0 %v314
    %563 = vmatprep.subr.mxu0 %v313
    %564 = vmatpush1.msra.mxu0 %v312
    %565 = vmatprep.subr.mxu0 %v311
    %566 = vmatpush1.msra.mxu0 %v310
    %567 = vmatprep.subr.mxu0 %v309
    %568 = vmatpush1.msra.mxu0 %v308
    %569 = vmatprep.subr.mxu0 %v307
    %570 = vmatpush1.msra.mxu0 %v306
    %571 = vmatprep.subr.mxu0 %v305
    %572 = vmatpush1.msra.mxu0 %v304
    %573 = vmatprep.subr.mxu0 %v303
    %574 = vmatpush1.msra.mxu0 %v302
    %575 = vmatprep.subr.mxu0 0.0
    %576 = vmatpush2.msra.mxu0 0.0
    %577 = vmatprep.subr.mxu0 0.0
    %578 = vmatpush2.msra.mxu0 0.0
    %579 = vmatprep.subr.mxu0 0.0
    %580 = vmatpush2.msra.mxu0 0.0
    %581 = vmatprep.subr.mxu0 0.0
    %582 = vmatpush2.msra.mxu0 0.0
    %583 = vmatprep.subr.mxu0 0.0
    %584 = vmatpush2.msra.mxu0 0.0
    %585 = vmatprep.subr.mxu0 0.0
    %586 = vmatpush2.msra.mxu0 0.0
    %587 = vmatprep.subr.mxu0 0.0
    %588 = vmatpush2.msra.mxu0 0.0
    %589 = vmatprep.subr.mxu0 0.0
    %590 = vmatpush2.msra.mxu0 0.0
    %591 = vmatprep.subr.mxu0 0.0
    %592 = vmatpush2.msra.mxu0 0.0
    %593 = vmatprep.subr.mxu0 0.0
    %594 = vmatpush2.msra.mxu0 0.0
    %595 = vmatprep.subr.mxu0 0.0
    %596 = vmatpush2.msra.mxu0 0.0
    %597 = vmatprep.subr.mxu0 0.0
    %598 = vmatpush2.msra.mxu0 0.0
    %599 = vmatprep.subr.mxu0 0.0
    %600 = vmatpush2.msra.mxu0 0.0
    %601 = vmatprep.subr.mxu0 0.0
    %602 = vmatpush2.msra.mxu0 0.0
    %603 = vmatprep.subr.mxu0 0.0
    %604 = vmatpush2.msra.mxu0 0.0
    %605 = vmatprep.subr.mxu0 0.0
    %606 = vmatpush2.msra.mxu0 0.0
    %607 = vmatprep.mubr.f32.mxu0 0.0
    %608 = vmatmul.mubr.f32.gmra.mxu0 %v541
    %v609 = vpop.f32.mrf.mxu0
    %v610 = vadd.f32 0.0, %v609
    %v611 = vpop.f32.mrf.mxu0
    %v612 = vadd.f32 0.0, %v611
    %613 = vdwg.mxu0
    %v616 = vrot.slane %v610, 6
    %v617 = vrot.slane %v612, 6
    %v620 = vadd.f32 %v292, %v616
    %v621 = vadd.f32 %v293, %v617
    %v622 = vxor.u32 %v620, 2147483648
    %v623 = vxor.u32 %v621, 2147483648
    %v624 = vmul.f32 %v622, 1.442695
    %v625 = vpow.pop %v624
    %v626 = vmul.f32 %v623, 1.442695
    %v627 = vpow.pop %v626
    %v628 = vadd.f32 %v625, 1.0
    %v629 = vadd.f32 %v627, 1.0
    %v630 = vrcp.pop %v628
    %v631 = vmul.f32 1.0, %v630
    %v632 = vrcp.pop %v629
    %v633 = vmul.f32 1.0, %v632
    %v634 = vtanh.pop %v621
    %v636 = vrot.slane %v527, 7
    %v638 = vmul.f32 %v631, %v636
    %v639 = vmul.f32 %v631, %v634
    %641 = vrot.lane.b32.xlu0 %v639, 64
    %v642 = vpop.permute.xlu0 %641
    %v644 = vadd.f32 %v638, %v642
    %v645 = vtanh.pop %v644
    %v646 = vmul.f32 %v633, %v645
    %648 = vrot.lane.b32.xlu0 %v646, 64
    %v649 = vpop.permute.xlu0 %648
    %vm651 = vcmask 256002
    %652 = vst.msk [vmem:[#allocation10] sm:$0x4] %vm651, %v649
    %vm653 = vcmask 518402
    %654 = vst.msk [vmem:[#allocation10 + $0x3] sm:$0x4] %vm653, %v649
    %v655 = vrot.slane %v646, 2
    %656 = vrot.lane.b32.xlu0 %v655, 64
    %v657 = vpop.permute.xlu0 %656
    %v658 = vsel %vm318, %v657, 0
    %660 = vmatprep.subr.mxu0 0.0
    %661 = vmatpush1.msra.mxu0 0.0
    %662 = vmatprep.subr.mxu0 0.0
    %663 = vmatpush1.msra.mxu0 0.0
    %664 = vmatprep.subr.mxu0 0.0
    %665 = vmatpush1.msra.mxu0 0.0
    %666 = vmatprep.subr.mxu0 0.0
    %667 = vmatpush1.msra.mxu0 0.0
    %668 = vmatprep.subr.mxu0 0.0
    %669 = vmatpush1.msra.mxu0 0.0
    %670 = vmatprep.subr.mxu0 0.0
    %671 = vmatpush1.msra.mxu0 0.0
    %672 = vmatprep.subr.mxu0 0.0
    %673 = vmatpush1.msra.mxu0 0.0
    %674 = vmatprep.subr.mxu0 0.0
    %675 = vmatpush1.msra.mxu0 0.0
    %676 = vmatprep.subr.mxu0 %v317
    %677 = vmatpush1.msra.mxu0 %v316
    %678 = vmatprep.subr.mxu0 %v315
    %679 = vmatpush1.msra.mxu0 %v314
    %680 = vmatprep.subr.mxu0 %v313
    %681 = vmatpush1.msra.mxu0 %v312
    %682 = vmatprep.subr.mxu0 %v311
    %683 = vmatpush1.msra.mxu0 %v310
    %684 = vmatprep.subr.mxu0 %v309
    %685 = vmatpush1.msra.mxu0 %v308
    %686 = vmatprep.subr.mxu0 %v307
    %687 = vmatpush1.msra.mxu0 %v306
    %688 = vmatprep.subr.mxu0 %v305
    %689 = vmatpush1.msra.mxu0 %v304
    %690 = vmatprep.subr.mxu0 %v303
    %691 = vmatpush1.msra.mxu0 %v302
    %692 = vmatprep.subr.mxu0 0.0
    %693 = vmatpush2.msra.mxu0 0.0
    %694 = vmatprep.subr.mxu0 0.0
    %695 = vmatpush2.msra.mxu0 0.0
    %696 = vmatprep.subr.mxu0 0.0
    %697 = vmatpush2.msra.mxu0 0.0
    %698 = vmatprep.subr.mxu0 0.0
    %699 = vmatpush2.msra.mxu0 0.0
    %700 = vmatprep.subr.mxu0 0.0
    %701 = vmatpush2.msra.mxu0 0.0
    %702 = vmatprep.subr.mxu0 0.0
    %703 = vmatpush2.msra.mxu0 0.0
    %704 = vmatprep.subr.mxu0 0.0
    %705 = vmatpush2.msra.mxu0 0.0
    %706 = vmatprep.subr.mxu0 0.0
    %707 = vmatpush2.msra.mxu0 0.0
    %708 = vmatprep.subr.mxu0 0.0
    %709 = vmatpush2.msra.mxu0 0.0
    %710 = vmatprep.subr.mxu0 0.0
    %711 = vmatpush2.msra.mxu0 0.0
    %712 = vmatprep.subr.mxu0 0.0
    %713 = vmatpush2.msra.mxu0 0.0
    %714 = vmatprep.subr.mxu0 0.0
    %715 = vmatpush2.msra.mxu0 0.0
    %716 = vmatprep.subr.mxu0 0.0
    %717 = vmatpush2.msra.mxu0 0.0
    %718 = vmatprep.subr.mxu0 0.0
    %719 = vmatpush2.msra.mxu0 0.0
    %720 = vmatprep.subr.mxu0 0.0
    %721 = vmatpush2.msra.mxu0 0.0
    %722 = vmatprep.subr.mxu0 0.0
    %723 = vmatpush2.msra.mxu0 0.0
    %724 = vmatprep.mubr.f32.mxu0 0.0
    %725 = vmatmul.mubr.f32.gmra.mxu0 %v658
    %v726 = vpop.f32.mrf.mxu0
    %v727 = vadd.f32 0.0, %v726
    %v728 = vpop.f32.mrf.mxu0
    %v729 = vadd.f32 0.0, %v728
    %730 = vdwg.mxu0
    %v733 = vrot.slane %v727, 5
    %v734 = vrot.slane %v729, 5
    %v737 = vadd.f32 %v300, %v733
    %v738 = vadd.f32 %v301, %v734
    %v739 = vxor.u32 %v737, 2147483648
    %v740 = vxor.u32 %v738, 2147483648
    %v741 = vmul.f32 %v739, 1.442695
    %v742 = vpow.pop %v741
    %v743 = vmul.f32 %v740, 1.442695
    %v744 = vpow.pop %v743
    %v745 = vadd.f32 %v742, 1.0
    %v746 = vadd.f32 %v744, 1.0
    %v747 = vrcp.pop %v745
    %v748 = vmul.f32 1.0, %v747
    %v749 = vrcp.pop %v746
    %v750 = vmul.f32 1.0, %v749
    %v751 = vtanh.pop %v738
    %v753 = vrot.slane %v644, 7
    %v755 = vmul.f32 %v748, %v753
    %v756 = vmul.f32 %v748, %v751
    %758 = vrot.lane.b32.xlu0 %v756, 64
    %v759 = vpop.permute.xlu0 %758
    %v761 = vadd.f32 %v755, %v759
    %v762 = vtanh.pop %v761
    %v763 = vmul.f32 %v750, %v762
    %765 = vrot.lane.b32.xlu0 %v763, 64
    %v766 = vpop.permute.xlu0 %765
    %vm768 = vcmask 257027
    %769 = vst.msk [vmem:[#allocation10] sm:$0x8] %vm768, %v766
    %vm770 = vcmask 519427
    %771 = vst.msk [vmem:[#allocation10 + $0x1] sm:$0x8] %vm770, %v766
    %v772 = vrot.slane %v763, 3
    %773 = vrot.lane.b32.xlu0 %v772, 64
    %v774 = vpop.permute.xlu0 %773
    %v775 = vsel %vm318, %v774, 0
    %777 = vmatprep.subr.mxu0 0.0
    %778 = vmatpush1.msra.mxu0 0.0
    %779 = vmatprep.subr.mxu0 0.0
    %780 = vmatpush1.msra.mxu0 0.0
    %781 = vmatprep.subr.mxu0 0.0
    %782 = vmatpush1.msra.mxu0 0.0
    %783 = vmatprep.subr.mxu0 0.0
    %784 = vmatpush1.msra.mxu0 0.0
    %785 = vmatprep.subr.mxu0 0.0
    %786 = vmatpush1.msra.mxu0 0.0
    %787 = vmatprep.subr.mxu0 0.0
    %788 = vmatpush1.msra.mxu0 0.0
    %789 = vmatprep.subr.mxu0 0.0
    %790 = vmatpush1.msra.mxu0 0.0
    %791 = vmatprep.subr.mxu0 0.0
    %792 = vmatpush1.msra.mxu0 0.0
    %793 = vmatprep.subr.mxu0 %v317
    %794 = vmatpush1.msra.mxu0 %v316
    %795 = vmatprep.subr.mxu0 %v315
    %796 = vmatpush1.msra.mxu0 %v314
    %797 = vmatprep.subr.mxu0 %v313
    %798 = vmatpush1.msra.mxu0 %v312
    %799 = vmatprep.subr.mxu0 %v311
    %800 = vmatpush1.msra.mxu0 %v310
    %801 = vmatprep.subr.mxu0 %v309
    %802 = vmatpush1.msra.mxu0 %v308
    %803 = vmatprep.subr.mxu0 %v307
    %804 = vmatpush1.msra.mxu0 %v306
    %805 = vmatprep.subr.mxu0 %v305
    %806 = vmatpush1.msra.mxu0 %v304
    %807 = vmatprep.subr.mxu0 %v303
    %808 = vmatpush1.msra.mxu0 %v302
    %809 = vmatprep.subr.mxu0 0.0
    %810 = vmatpush2.msra.mxu0 0.0
    %811 = vmatprep.subr.mxu0 0.0
    %812 = vmatpush2.msra.mxu0 0.0
    %813 = vmatprep.subr.mxu0 0.0
    %814 = vmatpush2.msra.mxu0 0.0
    %815 = vmatprep.subr.mxu0 0.0
    %816 = vmatpush2.msra.mxu0 0.0
    %817 = vmatprep.subr.mxu0 0.0
    %818 = vmatpush2.msra.mxu0 0.0
    %819 = vmatprep.subr.mxu0 0.0
    %820 = vmatpush2.msra.mxu0 0.0
    %821 = vmatprep.subr.mxu0 0.0
    %822 = vmatpush2.msra.mxu0 0.0
    %823 = vmatprep.subr.mxu0 0.0
    %824 = vmatpush2.msra.mxu0 0.0
    %825 = vmatprep.subr.mxu0 0.0
    %826 = vmatpush2.msra.mxu0 0.0
    %827 = vmatprep.subr.mxu0 0.0
    %828 = vmatpush2.msra.mxu0 0.0
    %829 = vmatprep.subr.mxu0 0.0
    %830 = vmatpush2.msra.mxu0 0.0
    %831 = vmatprep.subr.mxu0 0.0
    %832 = vmatpush2.msra.mxu0 0.0
    %833 = vmatprep.subr.mxu0 0.0
    %834 = vmatpush2.msra.mxu0 0.0
    %835 = vmatprep.subr.mxu0 0.0
    %836 = vmatpush2.msra.mxu0 0.0
    %837 = vmatprep.subr.mxu0 0.0
    %838 = vmatpush2.msra.mxu0 0.0
    %839 = vmatprep.subr.mxu0 0.0
    %840 = vmatpush2.msra.mxu0 0.0
    %841 = vmatprep.mubr.f32.mxu0 0.0
    %842 = vmatmul.mubr.f32.gmra.mxu0 %v775
    %v843 = vpop.f32.mrf.mxu0
    %v844 = vadd.f32 0.0, %v843
    %v845 = vpop.f32.mrf.mxu0
    %v846 = vadd.f32 0.0, %v845
    %847 = vdwg.mxu0
    %v850 = vrot.slane %v844, 4
    %v851 = vrot.slane %v846, 4
    %v854 = vadd.f32 %v276, %v850
    %v855 = vadd.f32 %v277, %v851
    %v856 = vxor.u32 %v854, 2147483648
    %v857 = vxor.u32 %v855, 2147483648
    %v858 = vmul.f32 %v856, 1.442695
    %v859 = vpow.pop %v858
    %v860 = vmul.f32 %v857, 1.442695
    %v861 = vpow.pop %v860
    %v862 = vadd.f32 %v859, 1.0
    %v863 = vadd.f32 %v861, 1.0
    %v864 = vrcp.pop %v862
    %v865 = vmul.f32 1.0, %v864
    %v866 = vrcp.pop %v863
    %v867 = vmul.f32 1.0, %v866
    %v868 = vtanh.pop %v855
    %v870 = vrot.slane %v761, 7
    %v872 = vmul.f32 %v865, %v870
    %v873 = vmul.f32 %v865, %v868
    %875 = vrot.lane.b32.xlu0 %v873, 64
    %v876 = vpop.permute.xlu0 %875
    %v878 = vadd.f32 %v872, %v876
    %v879 = vtanh.pop %v878
    %v880 = vmul.f32 %v867, %v879
    %882 = vrot.lane.b32.xlu0 %v880, 64
    %v883 = vpop.permute.xlu0 %882
    %vm885 = vcmask 258052
    %886 = vst.msk [vmem:[#allocation10] sm:$0x10] %vm885, %v883
    %vm887 = vcmask 520452
    %888 = vst.msk [vmem:[#allocation10 - $0x1] sm:$0x10] %vm887, %v883
    %v889 = vrot.slane %v880, 4
    %890 = vrot.lane.b32.xlu0 %v889, 64
    %v891 = vpop.permute.xlu0 %890
    %v892 = vsel %vm318, %v891, 0
    %894 = vmatprep.subr.mxu0 0.0
    %895 = vmatpush1.msra.mxu0 0.0
    %896 = vmatprep.subr.mxu0 0.0
    %897 = vmatpush1.msra.mxu0 0.0
    %898 = vmatprep.subr.mxu0 0.0
    %899 = vmatpush1.msra.mxu0 0.0
    %900 = vmatprep.subr.mxu0 0.0
    %901 = vmatpush1.msra.mxu0 0.0
    %902 = vmatprep.subr.mxu0 0.0
    %903 = vmatpush1.msra.mxu0 0.0
    %904 = vmatprep.subr.mxu0 0.0
    %905 = vmatpush1.msra.mxu0 0.0
    %906 = vmatprep.subr.mxu0 0.0
    %907 = vmatpush1.msra.mxu0 0.0
    %908 = vmatprep.subr.mxu0 0.0
    %909 = vmatpush1.msra.mxu0 0.0
    %910 = vmatprep.subr.mxu0 %v317
    %911 = vmatpush1.msra.mxu0 %v316
    %912 = vmatprep.subr.mxu0 %v315
    %913 = vmatpush1.msra.mxu0 %v314
    %914 = vmatprep.subr.mxu0 %v313
    %915 = vmatpush1.msra.mxu0 %v312
    %916 = vmatprep.subr.mxu0 %v311
    %917 = vmatpush1.msra.mxu0 %v310
    %918 = vmatprep.subr.mxu0 %v309
    %919 = vmatpush1.msra.mxu0 %v308
    %920 = vmatprep.subr.mxu0 %v307
    %921 = vmatpush1.msra.mxu0 %v306
    %922 = vmatprep.subr.mxu0 %v305
    %923 = vmatpush1.msra.mxu0 %v304
    %924 = vmatprep.subr.mxu0 %v303
    %925 = vmatpush1.msra.mxu0 %v302
    %926 = vmatprep.subr.mxu0 0.0
    %927 = vmatpush2.msra.mxu0 0.0
    %928 = vmatprep.subr.mxu0 0.0
    %929 = vmatpush2.msra.mxu0 0.0
    %930 = vmatprep.subr.mxu0 0.0
    %931 = vmatpush2.msra.mxu0 0.0
    %932 = vmatprep.subr.mxu0 0.0
    %933 = vmatpush2.msra.mxu0 0.0
    %934 = vmatprep.subr.mxu0 0.0
    %935 = vmatpush2.msra.mxu0 0.0
    %936 = vmatprep.subr.mxu0 0.0
    %937 = vmatpush2.msra.mxu0 0.0
    %938 = vmatprep.subr.mxu0 0.0
    %939 = vmatpush2.msra.mxu0 0.0
    %940 = vmatprep.subr.mxu0 0.0
    %941 = vmatpush2.msra.mxu0 0.0
    %942 = vmatprep.subr.mxu0 0.0
    %943 = vmatpush2.msra.mxu0 0.0
    %944 = vmatprep.subr.mxu0 0.0
    %945 = vmatpush2.msra.mxu0 0.0
    %946 = vmatprep.subr.mxu0 0.0
    %947 = vmatpush2.msra.mxu0 0.0
    %948 = vmatprep.subr.mxu0 0.0
    %949 = vmatpush2.msra.mxu0 0.0
    %950 = vmatprep.subr.mxu0 0.0
    %951 = vmatpush2.msra.mxu0 0.0
    %952 = vmatprep.subr.mxu0 0.0
    %953 = vmatpush2.msra.mxu0 0.0
    %954 = vmatprep.subr.mxu0 0.0
    %955 = vmatpush2.msra.mxu0 0.0
    %956 = vmatprep.subr.mxu0 0.0
    %957 = vmatpush2.msra.mxu0 0.0
    %958 = vmatprep.mubr.f32.mxu0 0.0
    %959 = vmatmul.mubr.f32.gmra.mxu0 %v892
    %v960 = vpop.f32.mrf.mxu0
    %v961 = vadd.f32 0.0, %v960
    %v962 = vpop.f32.mrf.mxu0
    %v963 = vadd.f32 0.0, %v962
    %964 = vdwg.mxu0
    %v967 = vrot.slane %v961, 3
    %v968 = vrot.slane %v963, 3
    %v971 = vadd.f32 %v284, %v967
    %v972 = vadd.f32 %v285, %v968
    %v973 = vxor.u32 %v971, 2147483648
    %v974 = vxor.u32 %v972, 2147483648
    %v975 = vmul.f32 %v973, 1.442695
    %v976 = vpow.pop %v975
    %v977 = vmul.f32 %v974, 1.442695
    %v978 = vpow.pop %v977
    %v979 = vadd.f32 %v976, 1.0
    %v980 = vadd.f32 %v978, 1.0
    %v981 = vrcp.pop %v979
    %v982 = vmul.f32 1.0, %v981
    %v983 = vrcp.pop %v980
    %v984 = vmul.f32 1.0, %v983
    %v985 = vtanh.pop %v972
    %v987 = vrot.slane %v878, 7
    %v989 = vmul.f32 %v982, %v987
    %v990 = vmul.f32 %v982, %v985
    %992 = vrot.lane.b32.xlu0 %v990, 64
    %v993 = vpop.permute.xlu0 %992
    %v995 = vadd.f32 %v989, %v993
    %v996 = vtanh.pop %v995
    %v997 = vmul.f32 %v984, %v996
    %999 = vrot.lane.b32.xlu0 %v997, 64
    %v1000 = vpop.permute.xlu0 %999
    %vm1002 = vcmask 259077
    %1003 = vst.msk [vmem:[#allocation10] sm:$0x20] %vm1002, %v1000
    %vm1004 = vcmask 521477
    %1005 = vst.msk [vmem:[#allocation10 - $0x3] sm:$0x20] %vm1004, %v1000
    %v1006 = vrot.slane %v997, 5
    %1007 = vrot.lane.b32.xlu0 %v1006, 64
    %v1008 = vpop.permute.xlu0 %1007
    %v1009 = vsel %vm318, %v1008, 0
    %1011 = vmatprep.subr.mxu0 0.0
    %1012 = vmatpush1.msra.mxu0 0.0
    %1013 = vmatprep.subr.mxu0 0.0
    %1014 = vmatpush1.msra.mxu0 0.0
    %1015 = vmatprep.subr.mxu0 0.0
    %1016 = vmatpush1.msra.mxu0 0.0
    %1017 = vmatprep.subr.mxu0 0.0
    %1018 = vmatpush1.msra.mxu0 0.0
    %1019 = vmatprep.subr.mxu0 0.0
    %1020 = vmatpush1.msra.mxu0 0.0
    %1021 = vmatprep.subr.mxu0 0.0
    %1022 = vmatpush1.msra.mxu0 0.0
    %1023 = vmatprep.subr.mxu0 0.0
    %1024 = vmatpush1.msra.mxu0 0.0
    %1025 = vmatprep.subr.mxu0 0.0
    %1026 = vmatpush1.msra.mxu0 0.0
    %1027 = vmatprep.subr.mxu0 %v317
    %1028 = vmatpush1.msra.mxu0 %v316
    %1029 = vmatprep.subr.mxu0 %v315
    %1030 = vmatpush1.msra.mxu0 %v314
    %1031 = vmatprep.subr.mxu0 %v313
    %1032 = vmatpush1.msra.mxu0 %v312
    %1033 = vmatprep.subr.mxu0 %v311
    %1034 = vmatpush1.msra.mxu0 %v310
    %1035 = vmatprep.subr.mxu0 %v309
    %1036 = vmatpush1.msra.mxu0 %v308
    %1037 = vmatprep.subr.mxu0 %v307
    %1038 = vmatpush1.msra.mxu0 %v306
    %1039 = vmatprep.subr.mxu0 %v305
    %1040 = vmatpush1.msra.mxu0 %v304
    %1041 = vmatprep.subr.mxu0 %v303
    %1042 = vmatpush1.msra.mxu0 %v302
    %1043 = vmatprep.subr.mxu0 0.0
    %1044 = vmatpush2.msra.mxu0 0.0
    %1045 = vmatprep.subr.mxu0 0.0
    %1046 = vmatpush2.msra.mxu0 0.0
    %1047 = vmatprep.subr.mxu0 0.0
    %1048 = vmatpush2.msra.mxu0 0.0
    %1049 = vmatprep.subr.mxu0 0.0
    %1050 = vmatpush2.msra.mxu0 0.0
    %1051 = vmatprep.subr.mxu0 0.0
    %1052 = vmatpush2.msra.mxu0 0.0
    %1053 = vmatprep.subr.mxu0 0.0
    %1054 = vmatpush2.msra.mxu0 0.0
    %1055 = vmatprep.subr.mxu0 0.0
    %1056 = vmatpush2.msra.mxu0 0.0
    %1057 = vmatprep.subr.mxu0 0.0
    %1058 = vmatpush2.msra.mxu0 0.0
    %1059 = vmatprep.subr.mxu0 0.0
    %1060 = vmatpush2.msra.mxu0 0.0
    %1061 = vmatprep.subr.mxu0 0.0
    %1062 = vmatpush2.msra.mxu0 0.0
    %1063 = vmatprep.subr.mxu0 0.0
    %1064 = vmatpush2.msra.mxu0 0.0
    %1065 = vmatprep.subr.mxu0 0.0
    %1066 = vmatpush2.msra.mxu0 0.0
    %1067 = vmatprep.subr.mxu0 0.0
    %1068 = vmatpush2.msra.mxu0 0.0
    %1069 = vmatprep.subr.mxu0 0.0
    %1070 = vmatpush2.msra.mxu0 0.0
    %1071 = vmatprep.subr.mxu0 0.0
    %1072 = vmatpush2.msra.mxu0 0.0
    %1073 = vmatprep.subr.mxu0 0.0
    %1074 = vmatpush2.msra.mxu0 0.0
    %1075 = vmatprep.mubr.f32.mxu0 0.0
    %1076 = vmatmul.mubr.f32.gmra.mxu0 %v1009
    %v1077 = vpop.f32.mrf.mxu0
    %v1078 = vadd.f32 0.0, %v1077
    %v1079 = vpop.f32.mrf.mxu0
    %v1080 = vadd.f32 0.0, %v1079
    %1081 = vdwg.mxu0
    %v1084 = vrot.slane %v1078, 2
    %v1085 = vrot.slane %v1080, 2
    %v1088 = vadd.f32 %v292, %v1084
    %v1089 = vadd.f32 %v293, %v1085
    %v1090 = vxor.u32 %v1088, 2147483648
    %v1091 = vxor.u32 %v1089, 2147483648
    %v1092 = vmul.f32 %v1090, 1.442695
    %v1093 = vpow.pop %v1092
    %v1094 = vmul.f32 %v1091, 1.442695
    %v1095 = vpow.pop %v1094
    %v1096 = vadd.f32 %v1093, 1.0
    %v1097 = vadd.f32 %v1095, 1.0
    %v1098 = vrcp.pop %v1096
    %v1099 = vmul.f32 1.0, %v1098
    %v1100 = vrcp.pop %v1097
    %v1101 = vmul.f32 1.0, %v1100
    %v1102 = vtanh.pop %v1089
    %v1104 = vrot.slane %v995, 7
    %v1106 = vmul.f32 %v1099, %v1104
    %v1107 = vmul.f32 %v1099, %v1102
    %1109 = vrot.lane.b32.xlu0 %v1107, 64
    %v1110 = vpop.permute.xlu0 %1109
    %v1112 = vadd.f32 %v1106, %v1110
    %v1113 = vtanh.pop %v1112
    %v1114 = vmul.f32 %v1101, %v1113
    %1116 = vrot.lane.b32.xlu0 %v1114, 64
    %v1117 = vpop.permute.xlu0 %1116
    %vm1119 = vcmask 260102
    %1120 = vst.msk [vmem:[#allocation10] sm:$0x40] %vm1119, %v1117
    %vm1121 = vcmask 522502
    %1122 = vst.msk [vmem:[#allocation10 - $0x5] sm:$0x40] %vm1121, %v1117
    %v1123 = vrot.slane %v1114, 6
    %1124 = vrot.lane.b32.xlu0 %v1123, 64
    %v1125 = vpop.permute.xlu0 %1124
    %v1126 = vsel %vm318, %v1125, 0
    %1128 = vmatprep.subr.mxu0 0.0
    %1129 = vmatpush1.msra.mxu0 0.0
    %1130 = vmatprep.subr.mxu0 0.0
    %1131 = vmatpush1.msra.mxu0 0.0
    %1132 = vmatprep.subr.mxu0 0.0
    %1133 = vmatpush1.msra.mxu0 0.0
    %1134 = vmatprep.subr.mxu0 0.0
    %1135 = vmatpush1.msra.mxu0 0.0
    %1136 = vmatprep.subr.mxu0 0.0
    %1137 = vmatpush1.msra.mxu0 0.0
    %1138 = vmatprep.subr.mxu0 0.0
    %1139 = vmatpush1.msra.mxu0 0.0
    %1140 = vmatprep.subr.mxu0 0.0
    %1141 = vmatpush1.msra.mxu0 0.0
    %1142 = vmatprep.subr.mxu0 0.0
    %1143 = vmatpush1.msra.mxu0 0.0
    %1144 = vmatprep.subr.mxu0 %v317
    %1145 = vmatpush1.msra.mxu0 %v316
    %1146 = vmatprep.subr.mxu0 %v315
    %1147 = vmatpush1.msra.mxu0 %v314
    %1148 = vmatprep.subr.mxu0 %v313
    %1149 = vmatpush1.msra.mxu0 %v312
    %1150 = vmatprep.subr.mxu0 %v311
    %1151 = vmatpush1.msra.mxu0 %v310
    %1152 = vmatprep.subr.mxu0 %v309
    %1153 = vmatpush1.msra.mxu0 %v308
    %1154 = vmatprep.subr.mxu0 %v307
    %1155 = vmatpush1.msra.mxu0 %v306
    %1156 = vmatprep.subr.mxu0 %v305
    %1157 = vmatpush1.msra.mxu0 %v304
    %1158 = vmatprep.subr.mxu0 %v303
    %1159 = vmatpush1.msra.mxu0 %v302
    %1160 = vmatprep.subr.mxu0 0.0
    %1161 = vmatpush2.msra.mxu0 0.0
    %1162 = vmatprep.subr.mxu0 0.0
    %1163 = vmatpush2.msra.mxu0 0.0
    %1164 = vmatprep.subr.mxu0 0.0
    %1165 = vmatpush2.msra.mxu0 0.0
    %1166 = vmatprep.subr.mxu0 0.0
    %1167 = vmatpush2.msra.mxu0 0.0
    %1168 = vmatprep.subr.mxu0 0.0
    %1169 = vmatpush2.msra.mxu0 0.0
    %1170 = vmatprep.subr.mxu0 0.0
    %1171 = vmatpush2.msra.mxu0 0.0
    %1172 = vmatprep.subr.mxu0 0.0
    %1173 = vmatpush2.msra.mxu0 0.0
    %1174 = vmatprep.subr.mxu0 0.0
    %1175 = vmatpush2.msra.mxu0 0.0
    %1176 = vmatprep.subr.mxu0 0.0
    %1177 = vmatpush2.msra.mxu0 0.0
    %1178 = vmatprep.subr.mxu0 0.0
    %1179 = vmatpush2.msra.mxu0 0.0
    %1180 = vmatprep.subr.mxu0 0.0
    %1181 = vmatpush2.msra.mxu0 0.0
    %1182 = vmatprep.subr.mxu0 0.0
    %1183 = vmatpush2.msra.mxu0 0.0
    %1184 = vmatprep.subr.mxu0 0.0
    %1185 = vmatpush2.msra.mxu0 0.0
    %1186 = vmatprep.subr.mxu0 0.0
    %1187 = vmatpush2.msra.mxu0 0.0
    %1188 = vmatprep.subr.mxu0 0.0
    %1189 = vmatpush2.msra.mxu0 0.0
    %1190 = vmatprep.subr.mxu0 0.0
    %1191 = vmatpush2.msra.mxu0 0.0
    %1192 = vmatprep.mubr.f32.mxu0 0.0
    %1193 = vmatmul.mubr.f32.gmra.mxu0 %v1126
    %v1194 = vpop.f32.mrf.mxu0
    %v1195 = vadd.f32 0.0, %v1194
    %v1196 = vpop.f32.mrf.mxu0
    %v1197 = vadd.f32 0.0, %v1196
    %1198 = vdwg.mxu0
    %v1201 = vrot.slane %v1195, 1
    %v1202 = vrot.slane %v1197, 1
    %v1205 = vadd.f32 %v300, %v1201
    %v1206 = vadd.f32 %v301, %v1202
    %v1207 = vxor.u32 %v1205, 2147483648
    %v1208 = vxor.u32 %v1206, 2147483648
    %v1209 = vmul.f32 %v1207, 1.442695
    %v1210 = vpow.pop %v1209
    %v1211 = vmul.f32 %v1208, 1.442695
    %v1212 = vpow.pop %v1211
    %v1213 = vadd.f32 %v1210, 1.0
    %v1214 = vadd.f32 %v1212, 1.0
    %v1215 = vrcp.pop %v1213
    %v1216 = vmul.f32 1.0, %v1215
    %v1217 = vrcp.pop %v1214
    %v1218 = vmul.f32 1.0, %v1217
    %v1219 = vtanh.pop %v1206
    %v1221 = vrot.slane %v1112, 7
    %v1223 = vmul.f32 %v1216, %v1221
    %v1224 = vmul.f32 %v1216, %v1219
    %1226 = vrot.lane.b32.xlu0 %v1224, 64
    %v1227 = vpop.permute.xlu0 %1226
    %v1229 = vadd.f32 %v1223, %v1227
    %v1230 = vtanh.pop %v1229
    %v1231 = vmul.f32 %v1218, %v1230
    %1233 = vrot.lane.b32.xlu0 %v1231, 64
    %v1234 = vpop.permute.xlu0 %1233
    %vm1236 = vcmask 261127
    %1237 = vst.msk [vmem:[#allocation10] sm:$0x80] %vm1236, %v1234
    %vm1238 = vcmask 523527
    %1239 = vst.msk [vmem:[#allocation10 - $0x7] sm:$0x80] %vm1238, %v1234
    %1240 = vst.msk [vmem:[#allocation11 - $0x7] sm:$0x80] %vm1236, %v1234
    %1241 = vrot.lane.b32.xlu0 %v1231, 32
    %v1242 = vpop.permute.xlu0 %1241
    %1244 = vst.msk [vmem:[#allocation11 - $0x6] sm:$0x80] %vm1236, %v1242
    %1246 = vrot.lane.b32.xlu0 %v1229, 64
    %v1247 = vpop.permute.xlu0 %1246
    %1249 = vst.msk [vmem:[#allocation13 - $0x7] sm:$0x80] %vm1236, %v1247
    %1250 = vrot.lane.b32.xlu0 %v1229, 32
    %v1251 = vpop.permute.xlu0 %1250
    %1253 = vst.msk [vmem:[#allocation13 - $0x6] sm:$0x80] %vm1236, %v1251
    // Predicated region
    $region30: #{_encoder_forward.1} parent=1 // pred_check
      _
    $region31: #{_encoder_forward.1} parent=1 // pred_check_branch
      %1255 = sbr.rel (0) target = $region33
    $region32: #{_encoder_forward.1} parent=1 // pred_region
      %s1257 = ssub.s32 128, 128
      %1258 = vsyncadd [#allocation7], %s1257
      %s1260 = sshll.u32 [#allocation10], 4
      %s1261 = int_to_ptr.vmem [resolvable:$true] %s1260
      %1263 = dma.vmem_to_hbm [thread:$0]  %s1261, 128, %s6, [#allocation7]
    $region33: #{_encoder_forward.1} parent=1 // pred_fallthru
      _
    // Predicated region
    $region34: #{_encoder_forward.1} parent=1 // pred_check
      _
    $region35: #{_encoder_forward.1} parent=1 // pred_check_branch
      %1265 = sbr.rel (0) target = $region37
    $region36: #{_encoder_forward.1} parent=1 // pred_region
      %s1267 = ssub.s32 32, 32
      %1268 = vsyncadd [#allocation12], %s1267
      %s1270 = sshll.u32 [#allocation11], 4
      %s1271 = int_to_ptr.vmem [resolvable:$true] %s1270
      %1273 = dma.vmem_to_hbm [thread:$0]  %s1271, 32, %s7, [#allocation12]
    $region37: #{_encoder_forward.1} parent=1 // pred_fallthru
      _
    // Predicated region
    $region38: #{_encoder_forward.1} parent=1 // pred_check
      _
    $region39: #{_encoder_forward.1} parent=1 // pred_check_branch
      %1275 = sbr.rel (0) target = $region41
    $region40: #{_encoder_forward.1} parent=1 // pred_region
      %s1277 = ssub.s32 32, 32
      %1278 = vsyncadd [#allocation12], %s1277
      %s1280 = sshll.u32 [#allocation13], 4
      %s1281 = int_to_ptr.vmem [resolvable:$true] %s1280
      %1283 = dma.vmem_to_hbm [thread:$0]  %s1281, 32, %s8, [#allocation12]
    $region41: #{_encoder_forward.1} parent=1 // pred_fallthru
      _
    // Predicated region
    $region42: #{_encoder_forward.1} parent=1 // pred_check
      _
    $region43: #{_encoder_forward.1} parent=1 // pred_check_branch
      %1285 = sbr.rel (0) target = $region45
    $region44: #{_encoder_forward.1} parent=1 // pred_region
      %1286 = dma.done [#allocation7], 128
    $region45: #{_encoder_forward.1} parent=1 // pred_fallthru
      _
    // Predicated region
    $region46: #{_encoder_forward.1} parent=1 // pred_check
      _
    $region47: #{_encoder_forward.1} parent=1 // pred_check_branch
      %1288 = sbr.rel (0) target = $region49
    $region48: #{_encoder_forward.1} parent=1 // pred_region
      %1289 = dma.done [#allocation12], 32
    $region49: #{_encoder_forward.1} parent=1 // pred_fallthru
      _
    // Predicated region
    $region50: #{_encoder_forward.1} parent=1 // pred_check
      _
    $region51: #{_encoder_forward.1} parent=1 // pred_check_branch
      %1291 = sbr.rel (0) target = $region53
    $region52: #{_encoder_forward.1} parent=1 // pred_region
      %1292 = dma.done [#allocation12], 32
    $region53: #{_encoder_forward.1} parent=1 // pred_fallthru
      _
    %1293 = vsyncpa [#allocation6], 1
    %1294 = vsyncpa [#allocation9], 1
    %1295 = vsyncpa [#allocation7], 1
    %1296 = vsyncpa [#allocation12], 1

</llo_original>
